<compile_context>
chip_gen: v6e
topology: v6e:2x2x1
jax: 0.10.0
libtpu: 0.0.40
codegen_flags: <defaults>
</compile_context>

<pallas_src>
import jax
import jax.numpy as jnp
from jax.experimental import pallas as pl
from jax.experimental.pallas import tpu as pltpu


def composer_kernel(x1_ref, x2_ref, wt_ref, wb_ref, bbig_ref,
                    wot_ref, wob_ref, bo_ref, out_ref):
    H = out_ref.shape[-1]

    x1_lo = x1_ref[...]                               # (TB, H) bf16
    x2_lo = x2_ref[...]                               # (TB, H) bf16

    # Split-K fused logits: [ r1 | r2 | z0 | z1 | z2 ]  -> (TB, 5H), f32 accumulate.
    big = jnp.dot(x1_lo, wt_ref[...], preferred_element_type=jnp.float32)
    big = big + jnp.dot(x2_lo, wb_ref[...], preferred_element_type=jnp.float32)
    big = big + bbig_ref[...]

    def sigmoid(v):
        # tanh form: one native EUP op per element (== sigmoid exactly).
        return 0.5 * (1.0 + jnp.tanh(0.5 * v))

    # Static, vreg-aligned slices (multiples of H lanes).
    r1 = sigmoid(big[:, :H])                          # gate on x1 half of cat
    r2 = sigmoid(big[:, H:2 * H])                     # gate on x2 half of cat
    z0 = big[:, 2 * H:3 * H]
    z1 = big[:, 3 * H:4 * H]
    z2 = big[:, 4 * H:]

    x1 = x1_lo.astype(jnp.float32)
    x2 = x2_lo.astype(jnp.float32)

    # Second matmul (also split-K): (cat * r) @ Wo^T.
    g1 = (x1 * r1).astype(wot_ref.dtype)
    g2 = (x2 * r2).astype(wob_ref.dtype)
    o_pre = jnp.dot(g1, wot_ref[...], preferred_element_type=jnp.float32)
    o_pre = o_pre + jnp.dot(g2, wob_ref[...], preferred_element_type=jnp.float32)
    o = sigmoid(o_pre + bo_ref[...])                  # (TB, H)

    # 3-way softmax over (z0, z1, z2), fully elementwise (no cross-lane work).
    m = jnp.maximum(jnp.maximum(z0, z1), z2)
    e0 = jnp.exp(z0 - m)
    e1 = jnp.exp(z1 - m)
    e2 = jnp.exp(z2 - m)
    inv_denom = pl.reciprocal(e0 + e1 + e2, approx=True)

    out_ref[...] = ((x1 * e0 + x2 * e1 + o * e2) * inv_denom).astype(out_ref.dtype)


def _round_up(x, m):
    return ((x + m - 1) // m) * m


def dual_gru_composer(x1, x2, params, *, tb=512):
    """x1, x2: (B, H). params: fused/pre-split weights (see init_params).

    tb = batch tile. Default 512 (~85% of HBM roofline per measured tile
    sweeps); clamped to the batch and split in two when a single tile would
    cover the whole batch so both v7x TensorCores get work.
    """
    assert x1.shape == x2.shape
    B, H = x1.shape

    tb = min(_round_up(tb, 8), _round_up(B, 8))
    Bp = _round_up(B, tb)
    # If everything fits in one tile, split it so the "parallel" batch axis
    # maps onto both TensorCores on v7x (weights are tiny, duplication is free).
    if Bp // tb == 1 and tb >= 16 and tb % 16 == 0:
        tb //= 2

    # Stream activations in bf16 (precision already bounded by bf16 MXU operands).
    x1_lo = x1.astype(jnp.bfloat16)
    x2_lo = x2.astype(jnp.bfloat16)
    if Bp != B:
        pad = ((0, Bp - B), (0, 0))
        x1_lo = jnp.pad(x1_lo, pad)
        x2_lo = jnp.pad(x2_lo, pad)

    w_top, w_bot, b_big = params["w_top"], params["w_bot"], params["b_big"]
    wo_top, wo_bot, bo = params["wo_top"], params["wo_bot"], params["bo"]
    H5 = w_top.shape[1]

    # VMEM budget from the tile: double-buffered bf16 x1/x2/out + (double-buffered)
    # resident weights, generous 4x headroom, clamped to 48 MiB (v7x has 64 MiB).
    act_bytes = 3 * 2 * tb * H * 2
    w_bytes = 2 * 2 * (w_top.size + w_bot.size + wo_top.size + wo_bot.size) \
        + 4 * (b_big.size + bo.size)
    vmem_limit = int(min(max(32 * 1024 * 1024, 4 * (act_bytes + w_bytes)),
                         48 * 1024 * 1024))

    cost = pl.CostEstimate(
        flops=2 * Bp * (2 * H) * (6 * H),            # (2H,5H) + (2H,H) matmuls
        transcendentals=7 * Bp * H,                  # 3 tanh-sigmoid + 3 exp + recip
        bytes_accessed=(2 * Bp * H * 2               # x1, x2 (bf16)
                        + Bp * H * 2                 # out (bf16)
                        + w_bytes),
    )

    out = pl.pallas_call(
        composer_kernel,
        out_shape=jax.ShapeDtypeStruct((Bp, H), jnp.bfloat16),
        grid=(Bp // tb,),
        in_specs=[
            pl.BlockSpec((tb, H), lambda i: (i, 0)),     # x1: streamed over batch
            pl.BlockSpec((tb, H), lambda i: (i, 0)),     # x2: streamed over batch
            pl.BlockSpec((H, H5), lambda i: (0, 0)),     # fused RHS, top K half
            pl.BlockSpec((H, H5), lambda i: (0, 0)),     # fused RHS, bottom K half
            pl.BlockSpec((1, H5), lambda i: (0, 0)),     # fused bias
            pl.BlockSpec((H, H), lambda i: (0, 0)),      # Wo^T, top K half
            pl.BlockSpec((H, H), lambda i: (0, 0)),      # Wo^T, bottom K half
            pl.BlockSpec((1, H), lambda i: (0, 0)),      # bo
        ],
        out_specs=pl.BlockSpec((tb, H), lambda i: (i, 0)),
        compiler_params=pltpu.CompilerParams(
            dimension_semantics=("parallel",),           # shard batch across TCs
            vmem_limit_bytes=vmem_limit,
        ),
        cost_estimate=cost,
    )(x1_lo, x2_lo, w_top, w_bot, b_big, wo_top, wo_bot, bo)
    return out[:B]


def init_params(key, h_dim, mxu_dtype=jnp.bfloat16):
    """Deterministic init mimicking nn.Linear defaults; returns (kernel params, raw)."""
    in_dim = 2 * h_dim
    bound = 1.0 / float(jnp.sqrt(in_dim))
    ks = jax.random.split(key, 6)

    # PyTorch-style weights: (out_features, in_features)
    w_z = jax.random.uniform(ks[0], (3 * h_dim, in_dim), jnp.float32, -bound, bound)
    b_z = jax.random.uniform(ks[1], (3 * h_dim,), jnp.float32, -bound, bound)
    w_r = jax.random.uniform(ks[2], (2 * h_dim, in_dim), jnp.float32, -bound, bound)
    b_r = jax.random.uniform(ks[3], (2 * h_dim,), jnp.float32, -bound, bound)
    w_o = jax.random.uniform(ks[4], (h_dim, in_dim), jnp.float32, -bound, bound)
    b_o = jax.random.uniform(ks[5], (h_dim,), jnp.float32, -bound, bound)

    # De-interleave z_gate rows (k::3 reproduces view(-1, H, 3) softmax axis) and
    # fuse all shared-LHS matmuls into one wide RHS: [Wr^T | Wz0^T | Wz1^T | Wz2^T].
    w_big = jnp.concatenate(
        [w_r.T, w_z[0::3, :].T, w_z[1::3, :].T, w_z[2::3, :].T], axis=1
    ).astype(mxu_dtype)                                              # (2H, 5H)
    b_big = jnp.concatenate(
        [b_r, b_z[0::3], b_z[1::3], b_z[2::3]]
    )[None, :].astype(jnp.float32)                                   # (1, 5H)
    wo_t = w_o.T.astype(mxu_dtype)                                   # (2H, H)

    params = {
        # Split-K halves so the kernel never needs a concatenated (B, 2H) LHS.
        "w_top": w_big[:h_dim, :],                                   # (H, 5H)
        "w_bot": w_big[h_dim:, :],                                   # (H, 5H)
        "b_big": b_big,                                              # (1, 5H)
        "wo_top": wo_t[:h_dim, :],                                   # (H, H)
        "wo_bot": wo_t[h_dim:, :],                                   # (H, H)
        "bo": b_o[None, :].astype(jnp.float32),                      # (1, H)
    }
    raw = {"w_z": w_z, "b_z": b_z, "w_r": w_r, "b_r": b_r, "w_o": w_o, "b_o": b_o}
    return params, raw


def reference_forward(x1, x2, raw, h_dim):
    """Pure-JAX f32 reference matching the PyTorch module exactly."""
    cat = jnp.concatenate([x1, x2], axis=1)
    r = jax.nn.sigmoid(cat @ raw["w_r"].T + raw["b_r"])
    o = jax.nn.sigmoid((cat * r) @ raw["w_o"].T + raw["b_o"])
    z_logits = (cat @ raw["w_z"].T + raw["b_z"]).reshape(-1, h_dim, 3)
    z = jax.nn.softmax(z_logits, axis=2)
    col = jnp.stack([x1, x2, o], axis=2)
    return jnp.sum(col * z, axis=2)


if __name__ == "__main__":
    B, H = 64, 128          # H=128 -> lane-dense blocks/stores; wrapper picks tb=32, grid=2
    key = jax.random.PRNGKey(0)
    k_x1, k_x2, k_p = jax.random.split(key, 3)

    x1 = jax.random.normal(k_x1, (B, H), jnp.float32)
    x2 = jax.random.normal(k_x2, (B, H), jnp.float32)
    params, raw = init_params(k_p, H)

    out = dual_gru_composer(x1, x2, params)
    out = jax.block_until_ready(out)

    ref = reference_forward(x1, x2, raw, H)
    assert out.shape == (B, H)
    # bf16 streaming + bf16 MXU operands + approx reciprocal -> relaxed tolerance.
    assert jnp.allclose(out.astype(jnp.float32), ref, atol=3e-2, rtol=3e-2), \
        "mismatch vs reference"

    print("KERNEL_OK")
</pallas_src>

<mosaic_0001>
module attributes {stable_mosaic.version = 11 : i64} {
  func.func @composer_kernel(%arg0: i32, %arg1: memref<32x128xbf16, #tpu.memory_space<vmem>>, %arg2: memref<32x128xbf16, #tpu.memory_space<vmem>>, %arg3: memref<128x640xbf16, #tpu.memory_space<vmem>>, %arg4: memref<128x640xbf16, #tpu.memory_space<vmem>>, %arg5: memref<1x640xf32, #tpu.memory_space<vmem>>, %arg6: memref<128x128xbf16, #tpu.memory_space<vmem>>, %arg7: memref<128x128xbf16, #tpu.memory_space<vmem>>, %arg8: memref<1x128xf32, #tpu.memory_space<vmem>>, %arg9: memref<32x128xbf16, #tpu.memory_space<vmem>>) attributes {dimension_semantics = [#tpu.dimension_semantics<parallel>], iteration_bounds = array<i64: 2>, scalar_prefetch = 0 : i64, scratch_operands = 0 : i64, tpu.core_type = #tpu.core_type<tc>, window_params = [{transform_indices = @transform_0, window_bounds = array<i64: 32, 128>}, {transform_indices = @transform_1, window_bounds = array<i64: 32, 128>}, {pipeline_mode = #tpu.pipeline_mode<synchronous>, transform_indices = @transform_2, window_bounds = array<i64: 128, 640>}, {pipeline_mode = #tpu.pipeline_mode<synchronous>, transform_indices = @transform_3, window_bounds = array<i64: 128, 640>}, {pipeline_mode = #tpu.pipeline_mode<synchronous>, transform_indices = @transform_4, window_bounds = array<i64: 1, 640>}, {pipeline_mode = #tpu.pipeline_mode<synchronous>, transform_indices = @transform_5, window_bounds = array<i64: 128, 128>}, {pipeline_mode = #tpu.pipeline_mode<synchronous>, transform_indices = @transform_6, window_bounds = array<i64: 128, 128>}, {pipeline_mode = #tpu.pipeline_mode<synchronous>, transform_indices = @transform_7, window_bounds = array<i64: 1, 128>}, {transform_indices = @transform_8, window_bounds = array<i64: 32, 128>}]} {
    %c0 = arith.constant 0 : index
    %c0_0 = arith.constant 0 : index
    %0 = vector.load %arg1[%c0, %c0_0] : memref<32x128xbf16, #tpu.memory_space<vmem>>, vector<32x128xbf16>
    %c0_1 = arith.constant 0 : index
    %c0_2 = arith.constant 0 : index
    %1 = vector.load %arg2[%c0_1, %c0_2] : memref<32x128xbf16, #tpu.memory_space<vmem>>, vector<32x128xbf16>
    %c0_3 = arith.constant 0 : index
    %c0_4 = arith.constant 0 : index
    %2 = vector.load %arg3[%c0_3, %c0_4] : memref<128x640xbf16, #tpu.memory_space<vmem>>, vector<128x640xbf16>
    %cst = arith.constant dense<0.000000e+00> : vector<32x640xf32>
    %3 = tpu.matmul %0, %2, %cst {dimension_numbers = #tpu.dot_dimension_numbers<[1], [0], [0], [1], [0, 0, 1, 1], [], []>} : vector<32x128xbf16>, vector<128x640xbf16>, vector<32x640xf32> -> vector<32x640xf32>
    %c0_5 = arith.constant 0 : index
    %c0_6 = arith.constant 0 : index
    %4 = vector.load %arg4[%c0_5, %c0_6] : memref<128x640xbf16, #tpu.memory_space<vmem>>, vector<128x640xbf16>
    %cst_7 = arith.constant dense<0.000000e+00> : vector<32x640xf32>
    %5 = tpu.matmul %1, %4, %cst_7 {dimension_numbers = #tpu.dot_dimension_numbers<[1], [0], [0], [1], [0, 0, 1, 1], [], []>} : vector<32x128xbf16>, vector<128x640xbf16>, vector<32x640xf32> -> vector<32x640xf32>
    %6 = arith.addf %3, %5 : vector<32x640xf32>
    %c0_8 = arith.constant 0 : index
    %c0_9 = arith.constant 0 : index
    %7 = vector.load %arg5[%c0_8, %c0_9] : memref<1x640xf32, #tpu.memory_space<vmem>>, vector<1x640xf32>
    %8 = vector.broadcast %7 : vector<1x640xf32> to vector<32x640xf32>
    %9 = arith.addf %6, %8 : vector<32x640xf32>
    %10 = vector.extract_strided_slice %9 {offsets = [0, 0], sizes = [32, 128], strides = [1, 1]} : vector<32x640xf32> to vector<32x128xf32>
    %cst_10 = arith.constant 5.000000e-01 : f32
    %11 = vector.broadcast %cst_10 : f32 to vector<32x128xf32>
    %12 = arith.mulf %11, %10 : vector<32x128xf32>
    %13 = math.tanh %12 : vector<32x128xf32>
    %cst_11 = arith.constant 1.000000e+00 : f32
    %14 = vector.broadcast %cst_11 : f32 to vector<32x128xf32>
    %15 = arith.addf %14, %13 : vector<32x128xf32>
    %cst_12 = arith.constant 5.000000e-01 : f32
    %16 = vector.broadcast %cst_12 : f32 to vector<32x128xf32>
    %17 = arith.mulf %16, %15 : vector<32x128xf32>
    %18 = vector.extract_strided_slice %9 {offsets = [0, 128], sizes = [32, 128], strides = [1, 1]} : vector<32x640xf32> to vector<32x128xf32>
    %cst_13 = arith.constant 5.000000e-01 : f32
    %19 = vector.broadcast %cst_13 : f32 to vector<32x128xf32>
    %20 = arith.mulf %19, %18 : vector<32x128xf32>
    %21 = math.tanh %20 : vector<32x128xf32>
    %cst_14 = arith.constant 1.000000e+00 : f32
    %22 = vector.broadcast %cst_14 : f32 to vector<32x128xf32>
    %23 = arith.addf %22, %21 : vector<32x128xf32>
    %cst_15 = arith.constant 5.000000e-01 : f32
    %24 = vector.broadcast %cst_15 : f32 to vector<32x128xf32>
    %25 = arith.mulf %24, %23 : vector<32x128xf32>
    %26 = vector.extract_strided_slice %9 {offsets = [0, 256], sizes = [32, 128], strides = [1, 1]} : vector<32x640xf32> to vector<32x128xf32>
    %27 = vector.extract_strided_slice %9 {offsets = [0, 384], sizes = [32, 128], strides = [1, 1]} : vector<32x640xf32> to vector<32x128xf32>
    %28 = vector.extract_strided_slice %9 {offsets = [0, 512], sizes = [32, 128], strides = [1, 1]} : vector<32x640xf32> to vector<32x128xf32>
    %29 = arith.extf %0 : vector<32x128xbf16> to vector<32x128xf32>
    %30 = arith.extf %1 : vector<32x128xbf16> to vector<32x128xf32>
    %31 = arith.mulf %29, %17 : vector<32x128xf32>
    %32 = arith.truncf %31 : vector<32x128xf32> to vector<32x128xbf16>
    %33 = arith.mulf %30, %25 : vector<32x128xf32>
    %34 = arith.truncf %33 : vector<32x128xf32> to vector<32x128xbf16>
    %c0_16 = arith.constant 0 : index
    %c0_17 = arith.constant 0 : index
    %35 = vector.load %arg6[%c0_16, %c0_17] : memref<128x128xbf16, #tpu.memory_space<vmem>>, vector<128x128xbf16>
    %cst_18 = arith.constant dense<0.000000e+00> : vector<32x128xf32>
    %36 = tpu.matmul %32, %35, %cst_18 {dimension_numbers = #tpu.dot_dimension_numbers<[1], [0], [0], [1], [0, 0, 1, 1], [], []>} : vector<32x128xbf16>, vector<128x128xbf16>, vector<32x128xf32> -> vector<32x128xf32>
    %c0_19 = arith.constant 0 : index
    %c0_20 = arith.constant 0 : index
    %37 = vector.load %arg7[%c0_19, %c0_20] : memref<128x128xbf16, #tpu.memory_space<vmem>>, vector<128x128xbf16>
    %cst_21 = arith.constant dense<0.000000e+00> : vector<32x128xf32>
    %38 = tpu.matmul %34, %37, %cst_21 {dimension_numbers = #tpu.dot_dimension_numbers<[1], [0], [0], [1], [0, 0, 1, 1], [], []>} : vector<32x128xbf16>, vector<128x128xbf16>, vector<32x128xf32> -> vector<32x128xf32>
    %39 = arith.addf %36, %38 : vector<32x128xf32>
    %c0_22 = arith.constant 0 : index
    %c0_23 = arith.constant 0 : index
    %40 = vector.load %arg8[%c0_22, %c0_23] : memref<1x128xf32, #tpu.memory_space<vmem>>, vector<1x128xf32>
    %41 = vector.broadcast %40 : vector<1x128xf32> to vector<32x128xf32>
    %42 = arith.addf %39, %41 : vector<32x128xf32>
    %cst_24 = arith.constant 5.000000e-01 : f32
    %43 = vector.broadcast %cst_24 : f32 to vector<32x128xf32>
    %44 = arith.mulf %43, %42 : vector<32x128xf32>
    %45 = math.tanh %44 : vector<32x128xf32>
    %cst_25 = arith.constant 1.000000e+00 : f32
    %46 = vector.broadcast %cst_25 : f32 to vector<32x128xf32>
    %47 = arith.addf %46, %45 : vector<32x128xf32>
    %cst_26 = arith.constant 5.000000e-01 : f32
    %48 = vector.broadcast %cst_26 : f32 to vector<32x128xf32>
    %49 = arith.mulf %48, %47 : vector<32x128xf32>
    %50 = arith.maximumf %26, %27 : vector<32x128xf32>
    %51 = arith.maximumf %50, %28 : vector<32x128xf32>
    %52 = arith.subf %26, %51 : vector<32x128xf32>
    %53 = math.exp %52 : vector<32x128xf32>
    %54 = arith.subf %27, %51 : vector<32x128xf32>
    %55 = math.exp %54 : vector<32x128xf32>
    %56 = arith.subf %28, %51 : vector<32x128xf32>
    %57 = math.exp %56 : vector<32x128xf32>
    %58 = arith.addf %53, %55 : vector<32x128xf32>
    %59 = arith.addf %58, %57 : vector<32x128xf32>
    %60 = tpu.reciprocal %59 {approx = true} : vector<32x128xf32> -> vector<32x128xf32>
    %61 = arith.mulf %29, %53 : vector<32x128xf32>
    %62 = arith.mulf %30, %55 : vector<32x128xf32>
    %63 = arith.addf %61, %62 : vector<32x128xf32>
    %64 = arith.mulf %49, %57 : vector<32x128xf32>
    %65 = arith.addf %63, %64 : vector<32x128xf32>
    %66 = arith.mulf %65, %60 : vector<32x128xf32>
    %67 = arith.truncf %66 : vector<32x128xf32> to vector<32x128xbf16>
    %c0_27 = arith.constant 0 : index
    %c0_28 = arith.constant 0 : index
    %68 = vector.load %arg9[%c0_27, %c0_28] : memref<32x128xbf16, #tpu.memory_space<vmem>>, vector<32x128xbf16>
    tpu.vector_store %arg9[%c0_27, %c0_28], %67 {strides = array<i32>} : memref<32x128xbf16, #tpu.memory_space<vmem>>, vector<32x128xbf16>,
    return
  }
  func.func @transform_0(%arg0: i32) -> (i32, i32) {
    %c0_i32 = arith.constant 0 : i32
    %c0_i32_0 = arith.constant 0 : i32
    return %arg0, %c0_i32 : i32, i32
  }
  func.func @transform_1(%arg0: i32) -> (i32, i32) {
    %c0_i32 = arith.constant 0 : i32
    %c0_i32_0 = arith.constant 0 : i32
    return %arg0, %c0_i32 : i32, i32
  }
  func.func @transform_2(%arg0: i32) -> (i32, i32) {
    %c0_i32 = arith.constant 0 : i32
    %c0_i32_0 = arith.constant 0 : i32
    %c0_i32_1 = arith.constant 0 : i32
    return %c0_i32, %c0_i32_0 : i32, i32
  }
  func.func @transform_3(%arg0: i32) -> (i32, i32) {
    %c0_i32 = arith.constant 0 : i32
    %c0_i32_0 = arith.constant 0 : i32
    %c0_i32_1 = arith.constant 0 : i32
    return %c0_i32, %c0_i32_0 : i32, i32
  }
  func.func @transform_4(%arg0: i32) -> (i32, i32) {
    %c0_i32 = arith.constant 0 : i32
    %c0_i32_0 = arith.constant 0 : i32
    %c0_i32_1 = arith.constant 0 : i32
    return %c0_i32, %c0_i32_0 : i32, i32
  }
  func.func @transform_5(%arg0: i32) -> (i32, i32) {
    %c0_i32 = arith.constant 0 : i32
    %c0_i32_0 = arith.constant 0 : i32
    %c0_i32_1 = arith.constant 0 : i32
    return %c0_i32, %c0_i32_0 : i32, i32
  }
  func.func @transform_6(%arg0: i32) -> (i32, i32) {
    %c0_i32 = arith.constant 0 : i32
    %c0_i32_0 = arith.constant 0 : i32
    %c0_i32_1 = arith.constant 0 : i32
    return %c0_i32, %c0_i32_0 : i32, i32
  }
  func.func @transform_7(%arg0: i32) -> (i32, i32) {
    %c0_i32 = arith.constant 0 : i32
    %c0_i32_0 = arith.constant 0 : i32
    %c0_i32_1 = arith.constant 0 : i32
    return %c0_i32, %c0_i32_0 : i32, i32
  }
  func.func @transform_8(%arg0: i32) -> (i32, i32) {
    %c0_i32 = arith.constant 0 : i32
    %c0_i32_0 = arith.constant 0 : i32
    return %arg0, %c0_i32 : i32, i32
  }
}

</mosaic_0001>

<llo_original>
// kernel: tpu_custom_call.1
$region0: #{tpu_custom_call.1}
  #allocation0 [shape = 'u32[]', space=smem, size = 0x4, offset = 0x4, fixed_abs, tag = 'smem constant byte address 0x4 - core index']
  #allocation1 [shape = 'u32[144,128]{1,0:T(1,128)}', space=vmem, size = 0x12000, scoped, tag = 'internal scratch']
  %s0 = inlined_call_operand.hbm [shape: bf16[64,128], index: 0, kind: input, shape index: {}]
  %s1 = inlined_call_operand.hbm [shape: bf16[64,128], index: 1, kind: input, shape index: {}]
  %s2 = inlined_call_operand.hbm [shape: bf16[128,640], index: 2, kind: input, shape index: {}]
  %s3 = inlined_call_operand.hbm [shape: bf16[128,640], index: 3, kind: input, shape index: {}]
  %s4 = inlined_call_operand.vmem [shape: f32[1,640], index: 4, kind: input, shape index: {}]
  %s5 = inlined_call_operand.hbm [shape: bf16[128,128], index: 5, kind: input, shape index: {}]
  %s6 = inlined_call_operand.hbm [shape: bf16[128,128], index: 6, kind: input, shape index: {}]
  %s7 = inlined_call_operand.vmem [shape: f32[1,128], index: 7, kind: input, shape index: {}]
  %s8 = inlined_call_operand.hbm [shape: bf16[64,128], index: 8, kind: output, shape index: {}]
  %s9 = sld [smem:[#allocation0]]
  $region89: #{tpu_custom_call.1} parent=0
    _
  %s11 = ssub.s32 1, %s9
  %s12 = scalar_select 0, %s11, %s9
  $region1: #{tpu_custom_call.1} parent=0
    #allocation2 [shape = 'u8[16384]{0}', space=vmem, size = 0x4000, scoped, tag = 'input window, operand 0']
    #allocation3 [shape = 's32[2]{0}', space=sflag, size = 0x8, scoped, tag = 'scoped memory for tpu_custom_call.1']
    #allocation4 [shape = 's32[2]{0}', space=sflag, size = 0x8, scoped, tag = 'scoped memory for tpu_custom_call.1']
    #allocation5 [shape = 'u8[16384]{0}', space=vmem, size = 0x4000, scoped, tag = 'input window, operand 1']
    #allocation6 [shape = 's32[2]{0}', space=sflag, size = 0x8, scoped, tag = 'scoped memory for tpu_custom_call.1']
    #allocation7 [shape = 'u8[163840]{0}', space=vmem, size = 0x28000, scoped, tag = 'input window, operand 2, single buffered']
    #allocation8 [shape = 'u8[163840]{0}', space=vmem, size = 0x28000, scoped, tag = 'input window, operand 3, single buffered']
    #allocation9 [shape = 's32[1]{0}', space=sflag, size = 0x4, scoped, tag = 'scoped memory for tpu_custom_call.1']
    #allocation10 [shape = 'u8[32768]{0}', space=vmem, size = 0x8000, scoped, tag = 'input window, operand 5, single buffered']
    #allocation11 [shape = 'u8[32768]{0}', space=vmem, size = 0x8000, scoped, tag = 'input window, operand 6, single buffered']
    #allocation12 [shape = 's32[1]{0}', space=sflag, size = 0x4, scoped, tag = 'scoped memory for tpu_custom_call.1']
    #allocation13 [shape = 'u8[16384]{0}', space=vmem, size = 0x4000, scoped, tag = 'output window, operand 0']
    %13 = vsyncpa [#allocation3], 0
    %s14 = scalar_lea.sflag [#allocation3], 1
    %15 = vsyncpa %s14, 0
    %16 = vsyncpa [#allocation6], 0
    %s17 = scalar_lea.sflag [#allocation6], 1
    %18 = vsyncpa %s17, 0
    %19 = vsyncpa [#allocation9], 0
    %20 = vsyncpa [#allocation12], 0
    %21 = vsyncpa [#allocation4], 0
    %s22 = scalar_lea.sflag [#allocation4], 1
    %23 = vsyncpa %s22, 0
    loop: start=0, step=1, limit=4
    $region2: #{tpu_custom_call.1} parent=1 // loop_pre_header
      _
    $region3: #{tpu_custom_call.1} parent=1 // loop_header
      %s25 = sphi 0, %s29
      %p26 = scmp.ge.s32.totalorder %s25, 4
      %s35 = sphi 0, %s37
      %s38 = sphi 0, %s35
      %s39 = sphi 0, %s38
      %s55 = sphi 0, %s39
      %s61 = sphi 0, %s63
      %s64 = sphi 0, %s61
      %s65 = sphi 0, %s64
      %s81 = sphi 0, %s65
      %s85 = sphi 0, %s85
      %s87 = sphi 0, %s85
      %s88 = sphi 0, %s87
      %s102 = sphi 0, %s88
      %s106 = sphi 0, %s106
      %s108 = sphi 0, %s106
      %s109 = sphi 0, %s108
      %s123 = sphi 0, %s109
      %s127 = sphi 0, %s127
      %s129 = sphi 0, %s127
      %s130 = sphi 0, %s129
      %s144 = sphi 0, %s130
      %s148 = sphi 0, %s148
      %s150 = sphi 0, %s148
      %s151 = sphi 0, %s150
      %s165 = sphi 0, %s151
      %s169 = sphi 0, %s169
      %s171 = sphi 0, %s169
      %s172 = sphi 0, %s171
      %s186 = sphi 0, %s172
      %s190 = sphi 0, %s190
      %s192 = sphi 0, %s190
      %s193 = sphi 0, %s192
      %s207 = sphi 0, %s193
      %s213 = sphi 0, %s215
      %s216 = sphi 0, %s213
      %s217 = sphi 0, %s216
      %s233 = sphi 0, %s217
    $region4: #{tpu_custom_call.1} parent=1 // loop_header_branch
      %28 = sbr.rel (%p26) target = $region8
    $region5: #{tpu_custom_call.1} parent=1 // loop_body
      %s30 = ssub.s32 %s25, 1
      %s31 = ssub.s32 %s25, 2
      %s32 = sadd.s32 %s25, 1
      %s33 = ssub.s32 %s25, %s32
      %p34 = scmp.eq.s32.totalorder %s33, 0
      %s36 = sadd.s32 %s35, 1
      %s37 = scalar_select %p34, %s35, %s36
      %p40 = pneg %p34
      %p41 = scmp.eq.s32.totalorder %s25, 1
      %p42 = por %p40, %p41
      %p43 = scmp.ne.s32.totalorder %s35, %s38
      %p44 = scmp.eq.s32.totalorder %s25, 0
      %p45 = por %p43, %p44
      %p46 = scmp.ne.s32.totalorder %s35, %s38
      %p47 = scmp.eq.s32.totalorder %s30, 1
      %p48 = por %p46, %p47
      %p49 = scmp.ne.s32.totalorder %s38, %s39
      %p50 = scmp.eq.s32.totalorder %s30, 0
      %p51 = por %p49, %p50
      %p52 = scmp.ne.s32.totalorder %s38, %s39
      %p53 = scmp.eq.s32.totalorder %s31, 1
      %p54 = por %p52, %p53
      %p56 = scmp.ne.s32.totalorder %s39, %s55
      %p57 = scmp.eq.s32.totalorder %s31, 0
      %p58 = por %p56, %p57
      %s59 = ssub.s32 %s25, %s32
      %p60 = scmp.eq.s32.totalorder %s59, 0
      %s62 = sadd.s32 %s61, 1
      %s63 = scalar_select %p60, %s61, %s62
      %p66 = pneg %p60
      %p67 = scmp.eq.s32.totalorder %s25, 1
      %p68 = por %p66, %p67
      %p69 = scmp.ne.s32.totalorder %s61, %s64
      %p70 = scmp.eq.s32.totalorder %s25, 0
      %p71 = por %p69, %p70
      %p72 = scmp.ne.s32.totalorder %s61, %s64
      %p73 = scmp.eq.s32.totalorder %s30, 1
      %p74 = por %p72, %p73
      %p75 = scmp.ne.s32.totalorder %s64, %s65
      %p76 = scmp.eq.s32.totalorder %s30, 0
      %p77 = por %p75, %p76
      %p78 = scmp.ne.s32.totalorder %s64, %s65
      %p79 = scmp.eq.s32.totalorder %s31, 1
      %p80 = por %p78, %p79
      %p82 = scmp.ne.s32.totalorder %s65, %s81
      %p83 = scmp.eq.s32.totalorder %s31, 0
      %p84 = por %p82, %p83
      %s86 = sadd.s32 %s85, 1
      %p89 = scmp.eq.s32.totalorder %s25, 1
      %p90 = scmp.ne.s32.totalorder %s85, %s87
      %p91 = scmp.eq.s32.totalorder %s25, 0
      %p92 = por %p90, %p91
      %p93 = scmp.ne.s32.totalorder %s85, %s87
      %p94 = scmp.eq.s32.totalorder %s30, 1
      %p95 = por %p93, %p94
      %p96 = scmp.ne.s32.totalorder %s87, %s88
      %p97 = scmp.eq.s32.totalorder %s30, 0
      %p98 = por %p96, %p97
      %p99 = scmp.ne.s32.totalorder %s87, %s88
      %p100 = scmp.eq.s32.totalorder %s31, 1
      %p101 = por %p99, %p100
      %p103 = scmp.ne.s32.totalorder %s88, %s102
      %p104 = scmp.eq.s32.totalorder %s31, 0
      %p105 = por %p103, %p104
      %s107 = sadd.s32 %s106, 1
      %p110 = scmp.eq.s32.totalorder %s25, 1
      %p111 = scmp.ne.s32.totalorder %s106, %s108
      %p112 = scmp.eq.s32.totalorder %s25, 0
      %p113 = por %p111, %p112
      %p114 = scmp.ne.s32.totalorder %s106, %s108
      %p115 = scmp.eq.s32.totalorder %s30, 1
      %p116 = por %p114, %p115
      %p117 = scmp.ne.s32.totalorder %s108, %s109
      %p118 = scmp.eq.s32.totalorder %s30, 0
      %p119 = por %p117, %p118
      %p120 = scmp.ne.s32.totalorder %s108, %s109
      %p121 = scmp.eq.s32.totalorder %s31, 1
      %p122 = por %p120, %p121
      %p124 = scmp.ne.s32.totalorder %s109, %s123
      %p125 = scmp.eq.s32.totalorder %s31, 0
      %p126 = por %p124, %p125
      %s128 = sadd.s32 %s127, 1
      %p131 = scmp.eq.s32.totalorder %s25, 1
      %p132 = scmp.ne.s32.totalorder %s127, %s129
      %p133 = scmp.eq.s32.totalorder %s25, 0
      %p134 = por %p132, %p133
      %p135 = scmp.ne.s32.totalorder %s127, %s129
      %p136 = scmp.eq.s32.totalorder %s30, 1
      %p137 = por %p135, %p136
      %p138 = scmp.ne.s32.totalorder %s129, %s130
      %p139 = scmp.eq.s32.totalorder %s30, 0
      %p140 = por %p138, %p139
      %p141 = scmp.ne.s32.totalorder %s129, %s130
      %p142 = scmp.eq.s32.totalorder %s31, 1
      %p143 = por %p141, %p142
      %p145 = scmp.ne.s32.totalorder %s130, %s144
      %p146 = scmp.eq.s32.totalorder %s31, 0
      %p147 = por %p145, %p146
      %s149 = sadd.s32 %s148, 1
      %p152 = scmp.eq.s32.totalorder %s25, 1
      %p153 = scmp.ne.s32.totalorder %s148, %s150
      %p154 = scmp.eq.s32.totalorder %s25, 0
      %p155 = por %p153, %p154
      %p156 = scmp.ne.s32.totalorder %s148, %s150
      %p157 = scmp.eq.s32.totalorder %s30, 1
      %p158 = por %p156, %p157
      %p159 = scmp.ne.s32.totalorder %s150, %s151
      %p160 = scmp.eq.s32.totalorder %s30, 0
      %p161 = por %p159, %p160
      %p162 = scmp.ne.s32.totalorder %s150, %s151
      %p163 = scmp.eq.s32.totalorder %s31, 1
      %p164 = por %p162, %p163
      %p166 = scmp.ne.s32.totalorder %s151, %s165
      %p167 = scmp.eq.s32.totalorder %s31, 0
      %p168 = por %p166, %p167
      %s170 = sadd.s32 %s169, 1
      %p173 = scmp.eq.s32.totalorder %s25, 1
      %p174 = scmp.ne.s32.totalorder %s169, %s171
      %p175 = scmp.eq.s32.totalorder %s25, 0
      %p176 = por %p174, %p175
      %p177 = scmp.ne.s32.totalorder %s169, %s171
      %p178 = scmp.eq.s32.totalorder %s30, 1
      %p179 = por %p177, %p178
      %p180 = scmp.ne.s32.totalorder %s171, %s172
      %p181 = scmp.eq.s32.totalorder %s30, 0
      %p182 = por %p180, %p181
      %p183 = scmp.ne.s32.totalorder %s171, %s172
      %p184 = scmp.eq.s32.totalorder %s31, 1
      %p185 = por %p183, %p184
      %p187 = scmp.ne.s32.totalorder %s172, %s186
      %p188 = scmp.eq.s32.totalorder %s31, 0
      %p189 = por %p187, %p188
      %s191 = sadd.s32 %s190, 1
      %p194 = scmp.eq.s32.totalorder %s25, 1
      %p195 = scmp.ne.s32.totalorder %s190, %s192
      %p196 = scmp.eq.s32.totalorder %s25, 0
      %p197 = por %p195, %p196
      %p198 = scmp.ne.s32.totalorder %s190, %s192
      %p199 = scmp.eq.s32.totalorder %s30, 1
      %p200 = por %p198, %p199
      %p201 = scmp.ne.s32.totalorder %s192, %s193
      %p202 = scmp.eq.s32.totalorder %s30, 0
      %p203 = por %p201, %p202
      %p204 = scmp.ne.s32.totalorder %s192, %s193
      %p205 = scmp.eq.s32.totalorder %s31, 1
      %p206 = por %p204, %p205
      %p208 = scmp.ne.s32.totalorder %s193, %s207
      %p209 = scmp.eq.s32.totalorder %s31, 0
      %p210 = por %p208, %p209
      %s211 = ssub.s32 %s25, %s32
      %p212 = scmp.eq.s32.totalorder %s211, 0
      %s214 = sadd.s32 %s213, 1
      %s215 = scalar_select %p212, %s213, %s214
      %p218 = pneg %p212
      %p219 = scmp.eq.s32.totalorder %s25, 1
      %p220 = por %p218, %p219
      %p221 = scmp.ne.s32.totalorder %s213, %s216
      %p222 = scmp.eq.s32.totalorder %s25, 0
      %p223 = por %p221, %p222
      %p224 = scmp.ne.s32.totalorder %s213, %s216
      %p225 = scmp.eq.s32.totalorder %s30, 1
      %p226 = por %p224, %p225
      %p227 = scmp.ne.s32.totalorder %s216, %s217
      %p228 = scmp.eq.s32.totalorder %s30, 0
      %p229 = por %p227, %p228
      %p230 = scmp.ne.s32.totalorder %s216, %s217
      %p231 = scmp.eq.s32.totalorder %s31, 1
      %p232 = por %p230, %p231
      %p234 = scmp.ne.s32.totalorder %s217, %s233
      %p235 = scmp.eq.s32.totalorder %s31, 0
      %p236 = por %p234, %p235
      %p237 = scmp.le.s32.totalorder 1, %s25
      %p238 = scmp.lt.s32.totalorder %s25, 3
      %p239 = pnand %p237, %p238
      %p240 = pneg %p239
      // Predicated region
      $region9: #{tpu_custom_call.1} parent=5 // pred_check
        _
      $region10: #{tpu_custom_call.1} parent=5 // pred_check_branch
        %242 = sbr.rel (%p239) target = $region12
      $region11: #{tpu_custom_call.1} parent=5 // pred_region
        %s243 = ssub.s32 %s25, 1
        // Predicated region
        $region13: #{tpu_custom_call.1} parent=11 // pred_check
          %p244 = pneg %p98
        $region14: #{tpu_custom_call.1} parent=11 // pred_check_branch
          %246 = sbr.rel (%p244) target = $region16
        $region15: #{tpu_custom_call.1} parent=11 // pred_region
          %s248 = ssub.s32 5120, 5120
          %249 = vsyncadd [#allocation6], %s248
          %s250 = sshll.u32 [#allocation7], 4
          %s251 = int_to_ptr.vmem [resolvable:$true] %s250
          %256 = dma.hbm_to_vmem [thread:$0]  %s2, 5120, %s251, [#allocation6], 320, 320, 20
        $region16: #{tpu_custom_call.1} parent=11 // pred_fallthru
          _
        // Predicated region
        $region17: #{tpu_custom_call.1} parent=11 // pred_check
          %p257 = pneg %p119
        $region18: #{tpu_custom_call.1} parent=11 // pred_check_branch
          %259 = sbr.rel (%p257) target = $region20
        $region19: #{tpu_custom_call.1} parent=11 // pred_region
          %s261 = ssub.s32 5120, 5120
          %262 = vsyncadd [#allocation9], %s261
          %s263 = sshll.u32 [#allocation8], 4
          %s264 = int_to_ptr.vmem [resolvable:$true] %s263
          %269 = dma.hbm_to_vmem [thread:$0]  %s3, 5120, %s264, [#allocation9], 320, 320, 20
        $region20: #{tpu_custom_call.1} parent=11 // pred_fallthru
          _
        // Predicated region
        $region21: #{tpu_custom_call.1} parent=11 // pred_check
          %p270 = pneg %p140
        $region22: #{tpu_custom_call.1} parent=11 // pred_check_branch
          %272 = sbr.rel (%p270) target = $region24
        $region23: #{tpu_custom_call.1} parent=11 // pred_region
          _
        $region24: #{tpu_custom_call.1} parent=11 // pred_fallthru
          _
        // Predicated region
        $region25: #{tpu_custom_call.1} parent=11 // pred_check
          %p273 = pneg %p161
        $region26: #{tpu_custom_call.1} parent=11 // pred_check_branch
          %275 = sbr.rel (%p273) target = $region28
        $region27: #{tpu_custom_call.1} parent=11 // pred_region
          %s277 = ssub.s32 1024, 1024
          %278 = vsyncadd [#allocation9], %s277
          %s279 = sshll.u32 [#allocation10], 4
          %s280 = int_to_ptr.vmem [resolvable:$true] %s279
          %285 = dma.hbm_to_vmem [thread:$0]  %s5, 1024, %s280, [#allocation9], 64, 64, 4
        $region28: #{tpu_custom_call.1} parent=11 // pred_fallthru
          _
        // Predicated region
        $region29: #{tpu_custom_call.1} parent=11 // pred_check
          %p286 = pneg %p182
        $region30: #{tpu_custom_call.1} parent=11 // pred_check_branch
          %288 = sbr.rel (%p286) target = $region32
        $region31: #{tpu_custom_call.1} parent=11 // pred_region
          %s290 = ssub.s32 1024, 1024
          %291 = vsyncadd [#allocation12], %s290
          %s292 = sshll.u32 [#allocation11], 4
          %s293 = int_to_ptr.vmem [resolvable:$true] %s292
          %298 = dma.hbm_to_vmem [thread:$0]  %s6, 1024, %s293, [#allocation12], 64, 64, 4
        $region32: #{tpu_custom_call.1} parent=11 // pred_fallthru
          _
        // Predicated region
        $region33: #{tpu_custom_call.1} parent=11 // pred_check
          %p299 = pneg %p203
        $region34: #{tpu_custom_call.1} parent=11 // pred_check_branch
          %301 = sbr.rel (%p299) target = $region36
        $region35: #{tpu_custom_call.1} parent=11 // pred_region
          _
        $region36: #{tpu_custom_call.1} parent=11 // pred_fallthru
          _
      $region12: #{tpu_custom_call.1} parent=5 // pred_fallthru
        _
      %p302 = scmp.lt.s32.totalorder %s25, 2
      // Predicated region
      $region37: #{tpu_custom_call.1} parent=5 // pred_check
        %p303 = pneg %p302
      $region38: #{tpu_custom_call.1} parent=5 // pred_check_branch
        %305 = sbr.rel (%p303) target = $region40
      $region39: #{tpu_custom_call.1} parent=5 // pred_region
        // Predicated region
        $region41: #{tpu_custom_call.1} parent=39 // pred_check
          %p306 = pneg %p45
        $region42: #{tpu_custom_call.1} parent=39 // pred_check_branch
          %308 = sbr.rel (%p306) target = $region44
        $region43: #{tpu_custom_call.1} parent=39 // pred_region
          %s309 = sand.u32 %s35, 1
          %s310 = scalar_lea.sflag [#allocation3], %s309
          %s311 = sand.u32 %s35, 1
          %s312 = smul.addr %s311, 16
          %s313 = scalar_lea.vmem [#allocation2], %s312
          %s314 = smul.u32 4, %s25
          %s316 = ssub.s32 256, 256
          %317 = vsyncadd %s310, %s316
          %s318 = smul.addr %s314, 64
          %s319 = scalar_lea.hbm %s0, %s318
          %s320 = sshll.u32 %s313, 4
          %s321 = int_to_ptr.vmem [resolvable:$true] %s320
          %326 = dma.hbm_to_vmem [thread:$0]  %s319, 256, %s321, %s310, 64, 64, 4
        $region44: #{tpu_custom_call.1} parent=39 // pred_fallthru
          _
        // Predicated region
        $region45: #{tpu_custom_call.1} parent=39 // pred_check
          %p327 = pneg %p71
        $region46: #{tpu_custom_call.1} parent=39 // pred_check_branch
          %329 = sbr.rel (%p327) target = $region48
        $region47: #{tpu_custom_call.1} parent=39 // pred_region
          %s330 = sand.u32 %s25, 1
          %s331 = scalar_lea.sflag [#allocation6], %s330
          %s332 = sand.u32 %s61, 1
          %s333 = smul.addr %s332, 16
          %s334 = scalar_lea.vmem [#allocation5], %s333
          %s335 = smul.u32 4, %s25
          %s337 = ssub.s32 256, 256
          %338 = vsyncadd %s331, %s337
          %s339 = smul.addr %s335, 64
          %s340 = scalar_lea.hbm %s1, %s339
          %s341 = sshll.u32 %s334, 4
          %s342 = int_to_ptr.vmem [resolvable:$true] %s341
          %347 = dma.hbm_to_vmem [thread:$0]  %s340, 256, %s342, %s331, 64, 64, 4
        $region48: #{tpu_custom_call.1} parent=39 // pred_fallthru
          _
      $region40: #{tpu_custom_call.1} parent=5 // pred_fallthru
        _
      %p348 = scmp.le.s32.totalorder 1, %s25
      %p349 = scmp.lt.s32.totalorder %s25, 3
      %p350 = pnand %p348, %p349
      %p351 = pneg %p350
      // Predicated region
      $region49: #{tpu_custom_call.1} parent=5 // pred_check
        _
      $region50: #{tpu_custom_call.1} parent=5 // pred_check_branch
        %353 = sbr.rel (%p350) target = $region52
      $region51: #{tpu_custom_call.1} parent=5 // pred_region
        %s354 = ssub.s32 %s25, 1
        %s355 = sand.u32 %s38, 1
        %s356 = scalar_lea.sflag [#allocation3], %s355
        %s357 = sand.u32 %s38, 1
        %s358 = smul.addr %s357, 16
        %s359 = scalar_lea.vmem [#allocation2], %s358
        // Predicated region
        $region53: #{tpu_custom_call.1} parent=51 // pred_check
          %p360 = pneg %p51
        $region54: #{tpu_custom_call.1} parent=51 // pred_check_branch
          %362 = sbr.rel (%p360) target = $region56
        $region55: #{tpu_custom_call.1} parent=51 // pred_region
          %363 = dma.done %s356, 256
        $region56: #{tpu_custom_call.1} parent=51 // pred_fallthru
          _
        %s364 = sand.u32 %s30, 1
        %s365 = scalar_lea.sflag [#allocation6], %s364
        %s366 = sand.u32 %s64, 1
        %s367 = smul.addr %s366, 16
        %s368 = scalar_lea.vmem [#allocation5], %s367
        // Predicated region
        $region57: #{tpu_custom_call.1} parent=51 // pred_check
          %p369 = pneg %p77
        $region58: #{tpu_custom_call.1} parent=51 // pred_check_branch
          %371 = sbr.rel (%p369) target = $region60
        $region59: #{tpu_custom_call.1} parent=51 // pred_region
          %372 = dma.done %s365, 256
        $region60: #{tpu_custom_call.1} parent=51 // pred_fallthru
          _
        // Predicated region
        $region61: #{tpu_custom_call.1} parent=51 // pred_check
          %p373 = pneg %p98
        $region62: #{tpu_custom_call.1} parent=51 // pred_check_branch
          %375 = sbr.rel (%p373) target = $region64
        $region63: #{tpu_custom_call.1} parent=51 // pred_region
          %376 = dma.done [#allocation6], 5120
        $region64: #{tpu_custom_call.1} parent=51 // pred_fallthru
          _
        // Predicated region
        $region65: #{tpu_custom_call.1} parent=51 // pred_check
          %p377 = pneg %p119
        $region66: #{tpu_custom_call.1} parent=51 // pred_check_branch
          %379 = sbr.rel (%p377) target = $region68
        $region67: #{tpu_custom_call.1} parent=51 // pred_region
          %380 = dma.done [#allocation9], 5120
        $region68: #{tpu_custom_call.1} parent=51 // pred_fallthru
          _
        // Predicated region
        $region69: #{tpu_custom_call.1} parent=51 // pred_check
          %p381 = pneg %p161
        $region70: #{tpu_custom_call.1} parent=51 // pred_check_branch
          %383 = sbr.rel (%p381) target = $region72
        $region71: #{tpu_custom_call.1} parent=51 // pred_region
          %384 = dma.done [#allocation9], 1024
        $region72: #{tpu_custom_call.1} parent=51 // pred_fallthru
          _
        // Predicated region
        $region73: #{tpu_custom_call.1} parent=51 // pred_check
          %p385 = pneg %p182
        $region74: #{tpu_custom_call.1} parent=51 // pred_check_branch
          %387 = sbr.rel (%p385) target = $region76
        $region75: #{tpu_custom_call.1} parent=51 // pred_region
          %388 = dma.done [#allocation12], 1024
        $region76: #{tpu_custom_call.1} parent=51 // pred_fallthru
          _
        %s389 = sand.u32 %s38, 1
        %s390 = scalar_lea.sflag [#allocation3], %s389
        %s391 = sand.u32 %s38, 1
        %s392 = smul.addr %s391, 16
        %s393 = scalar_lea.vmem [#allocation2], %s392
        %p394 = pneg %p51
        %p395 = pneg %p48
        %s396 = sand.u32 %s30, 1
        %s397 = scalar_lea.sflag [#allocation6], %s396
        %s398 = sand.u32 %s64, 1
        %s399 = smul.addr %s398, 16
        %s400 = scalar_lea.vmem [#allocation5], %s399
        %p401 = pneg %p77
        %p402 = pneg %p74
        %p403 = pneg %p98
        %p404 = pneg %p95
        %p405 = pneg %p119
        %p406 = pneg %p116
        %p407 = pneg %p140
        %p408 = pneg %p137
        %p409 = pneg %p161
        %p410 = pneg %p158
        %p411 = pneg %p182
        %p412 = pneg %p179
        %p413 = pneg %p203
        %p414 = pneg %p200
        %p415 = pneg %p229
        %p416 = pneg %p226
        %s417 = sand.u32 %s216, 1
        %s418 = scalar_lea.sflag [#allocation4], %s417
        %s419 = sand.u32 %s216, 1
        %s420 = smul.addr %s419, 16
        %s421 = scalar_lea.vmem [#allocation13], %s420
        %s422 = smul.u32 4, %s30
        %s423 = smul.u32 4, %s30
        %s424 = smul.u32 4, %s30
        %v426 = vld [vmem:[%s359] sm:$0xf]
        %v427 = vld [vmem:[%s359 + $0x4] sm:$0xf]
        %v428 = vld [vmem:[%s359 + $0x8] sm:$0xf]
        %v429 = vld [vmem:[%s359 + $0xc] sm:$0xf]
        %v430 = vld [vmem:[%s368] sm:$0xf]
        %v431 = vld [vmem:[%s368 + $0x4] sm:$0xf]
        %v432 = vld [vmem:[%s368 + $0x8] sm:$0xf]
        %v433 = vld [vmem:[%s368 + $0xc] sm:$0xf]
        %v434 = vld [vmem:[#allocation7] sm:$0xff]
        %v435 = vld [vmem:[#allocation7 + $0x8] sm:$0xff]
        %v436 = vld [vmem:[#allocation7 + $0x10] sm:$0xf]
        %v437 = vld [vmem:[#allocation7 + $0x14] sm:$0xff]
        %v438 = vld [vmem:[#allocation7 + $0x1c] sm:$0xff]
        %v439 = vld [vmem:[#allocation7 + $0x24] sm:$0xf]
        %v440 = vld [vmem:[#allocation7 + $0x28] sm:$0xff]
        %v441 = vld [vmem:[#allocation7 + $0x30] sm:$0xff]
        %v442 = vld [vmem:[#allocation7 + $0x38] sm:$0xf]
        %v443 = vld [vmem:[#allocation7 + $0x3c] sm:$0xff]
        %v444 = vld [vmem:[#allocation7 + $0x44] sm:$0xff]
        %v445 = vld [vmem:[#allocation7 + $0x4c] sm:$0xf]
        %v446 = vld [vmem:[#allocation7 + $0x50] sm:$0xff]
        %v447 = vld [vmem:[#allocation7 + $0x58] sm:$0xff]
        %v448 = vld [vmem:[#allocation7 + $0x60] sm:$0xf]
        %v449 = vld [vmem:[#allocation7 + $0x64] sm:$0xff]
        %v450 = vld [vmem:[#allocation7 + $0x6c] sm:$0xff]
        %v451 = vld [vmem:[#allocation7 + $0x74] sm:$0xf]
        %v452 = vld [vmem:[#allocation7 + $0x78] sm:$0xff]
        %v453 = vld [vmem:[#allocation7 + $0x80] sm:$0xff]
        %v454 = vld [vmem:[#allocation7 + $0x88] sm:$0xf]
        %v455 = vld [vmem:[#allocation7 + $0x8c] sm:$0xff]
        %v456 = vld [vmem:[#allocation7 + $0x94] sm:$0xff]
        %v457 = vld [vmem:[#allocation7 + $0x9c] sm:$0xf]
        %v458 = vld [vmem:[#allocation7 + $0xa0] sm:$0xff]
        %v459 = vld [vmem:[#allocation7 + $0xa8] sm:$0xff]
        %v460 = vld [vmem:[#allocation7 + $0xb0] sm:$0xf]
        %v461 = vld [vmem:[#allocation7 + $0xb4] sm:$0xff]
        %v462 = vld [vmem:[#allocation7 + $0xbc] sm:$0xff]
        %v463 = vld [vmem:[#allocation7 + $0xc4] sm:$0xf]
        %v464 = vld [vmem:[#allocation7 + $0xc8] sm:$0xff]
        %v465 = vld [vmem:[#allocation7 + $0xd0] sm:$0xff]
        %v466 = vld [vmem:[#allocation7 + $0xd8] sm:$0xf]
        %v467 = vld [vmem:[#allocation7 + $0xdc] sm:$0xff]
        %v468 = vld [vmem:[#allocation7 + $0xe4] sm:$0xff]
        %v469 = vld [vmem:[#allocation7 + $0xec] sm:$0xf]
        %v470 = vld [vmem:[#allocation7 + $0xf0] sm:$0xff]
        %v471 = vld [vmem:[#allocation7 + $0xf8] sm:$0xff]
        %v472 = vld [vmem:[#allocation7 + $0x100] sm:$0xf]
        %v473 = vld [vmem:[#allocation7 + $0x104] sm:$0xff]
        %v474 = vld [vmem:[#allocation7 + $0x10c] sm:$0xff]
        %v475 = vld [vmem:[#allocation7 + $0x114] sm:$0xf]
        %v476 = vld [vmem:[#allocation7 + $0x118] sm:$0xff]
        %v477 = vld [vmem:[#allocation7 + $0x120] sm:$0xff]
        %v478 = vld [vmem:[#allocation7 + $0x128] sm:$0xf]
        %v479 = vld [vmem:[#allocation7 + $0x12c] sm:$0xff]
        %v480 = vld [vmem:[#allocation7 + $0x134] sm:$0xff]
        %v481 = vld [vmem:[#allocation7 + $0x13c] sm:$0xf]
        %v482 = vld [vmem:[#allocation8] sm:$0xff]
        %v483 = vld [vmem:[#allocation8 + $0x8] sm:$0xff]
        %v484 = vld [vmem:[#allocation8 + $0x10] sm:$0xf]
        %v485 = vld [vmem:[#allocation8 + $0x14] sm:$0xff]
        %v486 = vld [vmem:[#allocation8 + $0x1c] sm:$0xff]
        %v487 = vld [vmem:[#allocation8 + $0x24] sm:$0xf]
        %v488 = vld [vmem:[#allocation8 + $0x28] sm:$0xff]
        %v489 = vld [vmem:[#allocation8 + $0x30] sm:$0xff]
        %v490 = vld [vmem:[#allocation8 + $0x38] sm:$0xf]
        %v491 = vld [vmem:[#allocation8 + $0x3c] sm:$0xff]
        %v492 = vld [vmem:[#allocation8 + $0x44] sm:$0xff]
        %v493 = vld [vmem:[#allocation8 + $0x4c] sm:$0xf]
        %v494 = vld [vmem:[#allocation8 + $0x50] sm:$0xff]
        %v495 = vld [vmem:[#allocation8 + $0x58] sm:$0xff]
        %v496 = vld [vmem:[#allocation8 + $0x60] sm:$0xf]
        %v497 = vld [vmem:[#allocation8 + $0x64] sm:$0xff]
        %v498 = vld [vmem:[#allocation8 + $0x6c] sm:$0xff]
        %v499 = vld [vmem:[#allocation8 + $0x74] sm:$0xf]
        %v500 = vld [vmem:[#allocation8 + $0x78] sm:$0xff]
        %v501 = vld [vmem:[#allocation8 + $0x80] sm:$0xff]
        %v502 = vld [vmem:[#allocation8 + $0x88] sm:$0xf]
        %v503 = vld [vmem:[#allocation8 + $0x8c] sm:$0xff]
        %v504 = vld [vmem:[#allocation8 + $0x94] sm:$0xff]
        %v505 = vld [vmem:[#allocation8 + $0x9c] sm:$0xf]
        %v506 = vld [vmem:[#allocation8 + $0xa0] sm:$0xff]
        %v507 = vld [vmem:[#allocation8 + $0xa8] sm:$0xff]
        %v508 = vld [vmem:[#allocation8 + $0xb0] sm:$0xf]
        %v509 = vld [vmem:[#allocation8 + $0xb4] sm:$0xff]
        %v510 = vld [vmem:[#allocation8 + $0xbc] sm:$0xff]
        %v511 = vld [vmem:[#allocation8 + $0xc4] sm:$0xf]
        %v512 = vld [vmem:[#allocation8 + $0xc8] sm:$0xff]
        %v513 = vld [vmem:[#allocation8 + $0xd0] sm:$0xff]
        %v514 = vld [vmem:[#allocation8 + $0xd8] sm:$0xf]
        %v515 = vld [vmem:[#allocation8 + $0xdc] sm:$0xff]
        %v516 = vld [vmem:[#allocation8 + $0xe4] sm:$0xff]
        %v517 = vld [vmem:[#allocation8 + $0xec] sm:$0xf]
        %v518 = vld [vmem:[#allocation8 + $0xf0] sm:$0xff]
        %v519 = vld [vmem:[#allocation8 + $0xf8] sm:$0xff]
        %v520 = vld [vmem:[#allocation8 + $0x100] sm:$0xf]
        %v521 = vld [vmem:[#allocation8 + $0x104] sm:$0xff]
        %v522 = vld [vmem:[#allocation8 + $0x10c] sm:$0xff]
        %v523 = vld [vmem:[#allocation8 + $0x114] sm:$0xf]
        %v524 = vld [vmem:[#allocation8 + $0x118] sm:$0xff]
        %v525 = vld [vmem:[#allocation8 + $0x120] sm:$0xff]
        %v526 = vld [vmem:[#allocation8 + $0x128] sm:$0xf]
        %v527 = vld [vmem:[#allocation8 + $0x12c] sm:$0xff]
        %v528 = vld [vmem:[#allocation8 + $0x134] sm:$0xff]
        %v529 = vld [vmem:[#allocation8 + $0x13c] sm:$0xf]
        %v534 = vunpack.c.l.b16 %v430
        %v535 = vunpack.c.l.b16 %v431
        %v536 = vunpack.c.l.b16 %v432
        %v537 = vunpack.c.l.b16 %v433
        %v538 = vpack.c.b16 %v535, %v534
        %v539 = vpack.c.b16 %v537, %v536
        %v590 = vunpack.c.l.b16 %v482
        %v591 = vunpack.c.h.b16 %v482
        %v592 = vunpack.c.l.b16 %v483
        %v593 = vunpack.c.h.b16 %v483
        %v594 = vunpack.c.l.b16 %v484
        %v595 = vunpack.c.l.b16 %v485
        %v596 = vunpack.c.h.b16 %v485
        %v597 = vunpack.c.l.b16 %v486
        %v598 = vunpack.c.h.b16 %v486
        %v599 = vunpack.c.l.b16 %v487
        %v600 = vunpack.c.l.b16 %v488
        %v601 = vunpack.c.h.b16 %v488
        %v602 = vunpack.c.l.b16 %v489
        %v603 = vunpack.c.h.b16 %v489
        %v604 = vunpack.c.l.b16 %v490
        %v605 = vunpack.c.l.b16 %v491
        %v606 = vunpack.c.h.b16 %v491
        %v607 = vunpack.c.l.b16 %v492
        %v608 = vunpack.c.h.b16 %v492
        %v609 = vunpack.c.l.b16 %v493
        %v610 = vunpack.c.l.b16 %v494
        %v611 = vunpack.c.h.b16 %v494
        %v612 = vunpack.c.l.b16 %v495
        %v613 = vunpack.c.h.b16 %v495
        %v614 = vunpack.c.l.b16 %v496
        %v615 = vunpack.c.l.b16 %v497
        %v616 = vunpack.c.h.b16 %v497
        %v617 = vunpack.c.l.b16 %v498
        %v618 = vunpack.c.h.b16 %v498
        %v619 = vunpack.c.l.b16 %v499
        %v620 = vunpack.c.l.b16 %v500
        %v621 = vunpack.c.h.b16 %v500
        %v622 = vunpack.c.l.b16 %v501
        %v623 = vunpack.c.h.b16 %v501
        %v624 = vunpack.c.l.b16 %v502
        %v625 = vunpack.c.l.b16 %v503
        %v626 = vunpack.c.h.b16 %v503
        %v627 = vunpack.c.l.b16 %v504
        %v628 = vunpack.c.h.b16 %v504
        %v629 = vunpack.c.l.b16 %v505
        %v630 = vunpack.c.l.b16 %v506
        %v631 = vunpack.c.h.b16 %v506
        %v632 = vunpack.c.l.b16 %v507
        %v633 = vunpack.c.h.b16 %v507
        %v634 = vunpack.c.l.b16 %v508
        %v635 = vunpack.c.l.b16 %v509
        %v636 = vunpack.c.h.b16 %v509
        %v637 = vunpack.c.l.b16 %v510
        %v638 = vunpack.c.h.b16 %v510
        %v639 = vunpack.c.l.b16 %v511
        %v640 = vunpack.c.l.b16 %v512
        %v641 = vunpack.c.h.b16 %v512
        %v642 = vunpack.c.l.b16 %v513
        %v643 = vunpack.c.h.b16 %v513
        %v644 = vunpack.c.l.b16 %v514
        %v645 = vunpack.c.l.b16 %v515
        %v646 = vunpack.c.h.b16 %v515
        %v647 = vunpack.c.l.b16 %v516
        %v648 = vunpack.c.h.b16 %v516
        %v649 = vunpack.c.l.b16 %v517
        %v650 = vunpack.c.l.b16 %v518
        %v651 = vunpack.c.h.b16 %v518
        %v652 = vunpack.c.l.b16 %v519
        %v653 = vunpack.c.h.b16 %v519
        %v654 = vunpack.c.l.b16 %v520
        %v655 = vunpack.c.l.b16 %v521
        %v656 = vunpack.c.h.b16 %v521
        %v657 = vunpack.c.l.b16 %v522
        %v658 = vunpack.c.h.b16 %v522
        %v659 = vunpack.c.l.b16 %v523
        %v660 = vunpack.c.l.b16 %v524
        %v661 = vunpack.c.h.b16 %v524
        %v662 = vunpack.c.l.b16 %v525
        %v663 = vunpack.c.h.b16 %v525
        %v664 = vunpack.c.l.b16 %v526
        %v665 = vunpack.c.l.b16 %v527
        %v666 = vunpack.c.h.b16 %v527
        %v667 = vunpack.c.l.b16 %v528
        %v668 = vunpack.c.h.b16 %v528
        %v669 = vunpack.c.l.b16 %v529
        %v670 = vpack.c.b16 %v595, %v590
        %v671 = vpack.c.b16 %v596, %v591
        %v672 = vpack.c.b16 %v597, %v592
        %v673 = vpack.c.b16 %v598, %v593
        %v674 = vpack.c.b16 %v599, %v594
        %v675 = vpack.c.b16 %v605, %v600
        %v676 = vpack.c.b16 %v606, %v601
        %v677 = vpack.c.b16 %v607, %v602
        %v678 = vpack.c.b16 %v608, %v603
        %v679 = vpack.c.b16 %v609, %v604
        %v680 = vpack.c.b16 %v615, %v610
        %v681 = vpack.c.b16 %v616, %v611
        %v682 = vpack.c.b16 %v617, %v612
        %v683 = vpack.c.b16 %v618, %v613
        %v684 = vpack.c.b16 %v619, %v614
        %v685 = vpack.c.b16 %v625, %v620
        %v686 = vpack.c.b16 %v626, %v621
        %v687 = vpack.c.b16 %v627, %v622
        %v688 = vpack.c.b16 %v628, %v623
        %v689 = vpack.c.b16 %v629, %v624
        %v690 = vpack.c.b16 %v635, %v630
        %v691 = vpack.c.b16 %v636, %v631
        %v692 = vpack.c.b16 %v637, %v632
        %v693 = vpack.c.b16 %v638, %v633
        %v694 = vpack.c.b16 %v639, %v634
        %v695 = vpack.c.b16 %v645, %v640
        %v696 = vpack.c.b16 %v646, %v641
        %v697 = vpack.c.b16 %v647, %v642
        %v698 = vpack.c.b16 %v648, %v643
        %v699 = vpack.c.b16 %v649, %v644
        %v700 = vpack.c.b16 %v655, %v650
        %v701 = vpack.c.b16 %v656, %v651
        %v702 = vpack.c.b16 %v657, %v652
        %v703 = vpack.c.b16 %v658, %v653
        %v704 = vpack.c.b16 %v659, %v654
        %v705 = vpack.c.b16 %v665, %v660
        %v706 = vpack.c.b16 %v666, %v661
        %v707 = vpack.c.b16 %v667, %v662
        %v708 = vpack.c.b16 %v668, %v663
        %v709 = vpack.c.b16 %v669, %v664
        %750 = vmatprep.subr.bf16.mxu0 %v706
        %751 = vmatpush1.bf16.msra.mxu0 %v705
        %752 = vmatprep.subr.bf16.mxu0 %v701
        %753 = vmatpush1.bf16.msra.mxu0 %v700
        %754 = vmatprep.subr.bf16.mxu0 %v696
        %755 = vmatpush1.bf16.msra.mxu0 %v695
        %756 = vmatprep.subr.bf16.mxu0 %v691
        %757 = vmatpush1.bf16.msra.mxu0 %v690
        %758 = vmatprep.subr.bf16.mxu0 %v686
        %759 = vmatpush1.bf16.msra.mxu0 %v685
        %760 = vmatprep.subr.bf16.mxu0 %v681
        %761 = vmatpush1.bf16.msra.mxu0 %v680
        %762 = vmatprep.subr.bf16.mxu0 %v676
        %763 = vmatpush1.bf16.msra.mxu0 %v675
        %764 = vmatprep.subr.bf16.mxu0 %v671
        %765 = vmatpush1.bf16.msra.mxu0 %v670
        %766 = vmatprep.subr.bf16.mxu0 0
        %767 = vmatpush2.bf16.msra.mxu0 0
        %768 = vmatprep.subr.bf16.mxu0 0
        %769 = vmatpush2.bf16.msra.mxu0 0
        %770 = vmatprep.subr.bf16.mxu0 0
        %771 = vmatpush2.bf16.msra.mxu0 0
        %772 = vmatprep.subr.bf16.mxu0 0
        %773 = vmatpush2.bf16.msra.mxu0 0
        %774 = vmatprep.subr.bf16.mxu0 0
        %775 = vmatpush2.bf16.msra.mxu0 0
        %776 = vmatprep.subr.bf16.mxu0 0
        %777 = vmatpush2.bf16.msra.mxu0 0
        %778 = vmatprep.subr.bf16.mxu0 0
        %779 = vmatpush2.bf16.msra.mxu0 0
        %780 = vmatprep.subr.bf16.mxu0 0
        %781 = vmatpush2.bf16.msra.mxu0 0
        %782 = vmatprep.mubr.bf16.mxu0 0
        %783 = vmatmul.mubr.bf16.gmra.mxu0 %v538
        %v784 = vpop.f32.mrf.mxu0
        %v785 = vadd.f32 0.0, %v784
        %v786 = vpop.f32.mrf.mxu0
        %v787 = vadd.f32 0.0, %v786
        %v788 = vpop.f32.mrf.mxu0
        %v789 = vadd.f32 0.0, %v788
        %v790 = vpop.f32.mrf.mxu0
        %v791 = vadd.f32 0.0, %v790
        %792 = vmatprep.mubr.bf16.mxu0 0
        %793 = vmatmul.mubr.bf16.gmra.mxu0 %v539
        %v794 = vpop.f32.mrf.mxu0
        %v795 = vadd.f32 0.0, %v794
        %v796 = vpop.f32.mrf.mxu0
        %v797 = vadd.f32 0.0, %v796
        %v798 = vpop.f32.mrf.mxu0
        %v799 = vadd.f32 0.0, %v798
        %v800 = vpop.f32.mrf.mxu0
        %v801 = vadd.f32 0.0, %v800
        %802 = vdwg.mxu0
        %803 = vmatprep.subr.bf16.mxu0 %v708
        %804 = vmatpush1.bf16.msra.mxu0 %v707
        %805 = vmatprep.subr.bf16.mxu0 %v703
        %806 = vmatpush1.bf16.msra.mxu0 %v702
        %807 = vmatprep.subr.bf16.mxu0 %v698
        %808 = vmatpush1.bf16.msra.mxu0 %v697
        %809 = vmatprep.subr.bf16.mxu0 %v693
        %810 = vmatpush1.bf16.msra.mxu0 %v692
        %811 = vmatprep.subr.bf16.mxu0 %v688
        %812 = vmatpush1.bf16.msra.mxu0 %v687
        %813 = vmatprep.subr.bf16.mxu0 %v683
        %814 = vmatpush1.bf16.msra.mxu0 %v682
        %815 = vmatprep.subr.bf16.mxu0 %v678
        %816 = vmatpush1.bf16.msra.mxu0 %v677
        %817 = vmatprep.subr.bf16.mxu0 %v673
        %818 = vmatpush1.bf16.msra.mxu0 %v672
        %819 = vmatprep.subr.bf16.mxu0 0
        %820 = vmatpush2.bf16.msra.mxu0 0
        %821 = vmatprep.subr.bf16.mxu0 0
        %822 = vmatpush2.bf16.msra.mxu0 0
        %823 = vmatprep.subr.bf16.mxu0 0
        %824 = vmatpush2.bf16.msra.mxu0 0
        %825 = vmatprep.subr.bf16.mxu0 0
        %826 = vmatpush2.bf16.msra.mxu0 0
        %827 = vmatprep.subr.bf16.mxu0 0
        %828 = vmatpush2.bf16.msra.mxu0 0
        %829 = vmatprep.subr.bf16.mxu0 0
        %830 = vmatpush2.bf16.msra.mxu0 0
        %831 = vmatprep.subr.bf16.mxu0 0
        %832 = vmatpush2.bf16.msra.mxu0 0
        %833 = vmatprep.subr.bf16.mxu0 0
        %834 = vmatpush2.bf16.msra.mxu0 0
        %835 = vmatprep.mubr.bf16.mxu0 0
        %836 = vmatmul.mubr.bf16.gmra.mxu0 %v538
        %v837 = vpop.f32.mrf.mxu0
        %v838 = vadd.f32 0.0, %v837
        %v839 = vpop.f32.mrf.mxu0
        %v840 = vadd.f32 0.0, %v839
        %v841 = vpop.f32.mrf.mxu0
        %v842 = vadd.f32 0.0, %v841
        %v843 = vpop.f32.mrf.mxu0
        %v844 = vadd.f32 0.0, %v843
        %845 = vmatprep.mubr.bf16.mxu0 0
        %846 = vmatmul.mubr.bf16.gmra.mxu0 %v539
        %v847 = vpop.f32.mrf.mxu0
        %v848 = vadd.f32 0.0, %v847
        %v849 = vpop.f32.mrf.mxu0
        %v850 = vadd.f32 0.0, %v849
        %v851 = vpop.f32.mrf.mxu0
        %v852 = vadd.f32 0.0, %v851
        %v853 = vpop.f32.mrf.mxu0
        %v854 = vadd.f32 0.0, %v853
        %855 = vdwg.mxu0
        %856 = vmatprep.subr.bf16.mxu0 0
        %857 = vmatpush1.bf16.msra.mxu0 %v709
        %858 = vmatprep.subr.bf16.mxu0 0
        %859 = vmatpush1.bf16.msra.mxu0 %v704
        %860 = vmatprep.subr.bf16.mxu0 0
        %861 = vmatpush1.bf16.msra.mxu0 %v699
        %862 = vmatprep.subr.bf16.mxu0 0
        %863 = vmatpush1.bf16.msra.mxu0 %v694
        %864 = vmatprep.subr.bf16.mxu0 0
        %865 = vmatpush1.bf16.msra.mxu0 %v689
        %866 = vmatprep.subr.bf16.mxu0 0
        %867 = vmatpush1.bf16.msra.mxu0 %v684
        %868 = vmatprep.subr.bf16.mxu0 0
        %869 = vmatpush1.bf16.msra.mxu0 %v679
        %870 = vmatprep.subr.bf16.mxu0 0
        %871 = vmatpush1.bf16.msra.mxu0 %v674
        %872 = vmatprep.subr.bf16.mxu0 0
        %873 = vmatpush2.bf16.msra.mxu0 0
        %874 = vmatprep.subr.bf16.mxu0 0
        %875 = vmatpush2.bf16.msra.mxu0 0
        %876 = vmatprep.subr.bf16.mxu0 0
        %877 = vmatpush2.bf16.msra.mxu0 0
        %878 = vmatprep.subr.bf16.mxu0 0
        %879 = vmatpush2.bf16.msra.mxu0 0
        %880 = vmatprep.subr.bf16.mxu0 0
        %881 = vmatpush2.bf16.msra.mxu0 0
        %882 = vmatprep.subr.bf16.mxu0 0
        %883 = vmatpush2.bf16.msra.mxu0 0
        %884 = vmatprep.subr.bf16.mxu0 0
        %885 = vmatpush2.bf16.msra.mxu0 0
        %886 = vmatprep.subr.bf16.mxu0 0
        %887 = vmatpush2.bf16.msra.mxu0 0
        %888 = vmatprep.mubr.bf16.mxu0 0
        %889 = vmatmul.mubr.bf16.gmra.mxu0 %v538
        %v890 = vpop.f32.mrf.mxu0
        %v891 = vadd.f32 0.0, %v890
        %v892 = vpop.f32.mrf.mxu0
        %v893 = vpop.f32.mrf.mxu0
        %v894 = vadd.f32 0.0, %v893
        %v895 = vpop.f32.mrf.mxu0
        %896 = vmatprep.mubr.bf16.mxu0 0
        %897 = vmatmul.mubr.bf16.gmra.mxu0 %v539
        %v898 = vpop.f32.mrf.mxu0
        %v899 = vadd.f32 0.0, %v898
        %v900 = vpop.f32.mrf.mxu0
        %v901 = vpop.f32.mrf.mxu0
        %v902 = vadd.f32 0.0, %v901
        %v903 = vpop.f32.mrf.mxu0
        %904 = vdwg.mxu0
        %v909 = vunpack.c.l.b16 %v426
        %v910 = vunpack.c.l.b16 %v427
        %v911 = vunpack.c.l.b16 %v428
        %v912 = vunpack.c.l.b16 %v429
        %v913 = vpack.c.b16 %v910, %v909
        %v914 = vpack.c.b16 %v912, %v911
        %v965 = vunpack.c.l.b16 %v434
        %v966 = vunpack.c.h.b16 %v434
        %v967 = vunpack.c.l.b16 %v435
        %v968 = vunpack.c.h.b16 %v435
        %v969 = vunpack.c.l.b16 %v436
        %v970 = vunpack.c.l.b16 %v437
        %v971 = vunpack.c.h.b16 %v437
        %v972 = vunpack.c.l.b16 %v438
        %v973 = vunpack.c.h.b16 %v438
        %v974 = vunpack.c.l.b16 %v439
        %v975 = vunpack.c.l.b16 %v440
        %v976 = vunpack.c.h.b16 %v440
        %v977 = vunpack.c.l.b16 %v441
        %v978 = vunpack.c.h.b16 %v441
        %v979 = vunpack.c.l.b16 %v442
        %v980 = vunpack.c.l.b16 %v443
        %v981 = vunpack.c.h.b16 %v443
        %v982 = vunpack.c.l.b16 %v444
        %v983 = vunpack.c.h.b16 %v444
        %v984 = vunpack.c.l.b16 %v445
        %v985 = vunpack.c.l.b16 %v446
        %v986 = vunpack.c.h.b16 %v446
        %v987 = vunpack.c.l.b16 %v447
        %v988 = vunpack.c.h.b16 %v447
        %v989 = vunpack.c.l.b16 %v448
        %v990 = vunpack.c.l.b16 %v449
        %v991 = vunpack.c.h.b16 %v449
        %v992 = vunpack.c.l.b16 %v450
        %v993 = vunpack.c.h.b16 %v450
        %v994 = vunpack.c.l.b16 %v451
        %v995 = vunpack.c.l.b16 %v452
        %v996 = vunpack.c.h.b16 %v452
        %v997 = vunpack.c.l.b16 %v453
        %v998 = vunpack.c.h.b16 %v453
        %v999 = vunpack.c.l.b16 %v454
        %v1000 = vunpack.c.l.b16 %v455
        %v1001 = vunpack.c.h.b16 %v455
        %v1002 = vunpack.c.l.b16 %v456
        %v1003 = vunpack.c.h.b16 %v456
        %v1004 = vunpack.c.l.b16 %v457
        %v1005 = vunpack.c.l.b16 %v458
        %v1006 = vunpack.c.h.b16 %v458
        %v1007 = vunpack.c.l.b16 %v459
        %v1008 = vunpack.c.h.b16 %v459
        %v1009 = vunpack.c.l.b16 %v460
        %v1010 = vunpack.c.l.b16 %v461
        %v1011 = vunpack.c.h.b16 %v461
        %v1012 = vunpack.c.l.b16 %v462
        %v1013 = vunpack.c.h.b16 %v462
        %v1014 = vunpack.c.l.b16 %v463
        %v1015 = vunpack.c.l.b16 %v464
        %v1016 = vunpack.c.h.b16 %v464
        %v1017 = vunpack.c.l.b16 %v465
        %v1018 = vunpack.c.h.b16 %v465
        %v1019 = vunpack.c.l.b16 %v466
        %v1020 = vunpack.c.l.b16 %v467
        %v1021 = vunpack.c.h.b16 %v467
        %v1022 = vunpack.c.l.b16 %v468
        %v1023 = vunpack.c.h.b16 %v468
        %v1024 = vunpack.c.l.b16 %v469
        %v1025 = vunpack.c.l.b16 %v470
        %v1026 = vunpack.c.h.b16 %v470
        %v1027 = vunpack.c.l.b16 %v471
        %v1028 = vunpack.c.h.b16 %v471
        %v1029 = vunpack.c.l.b16 %v472
        %v1030 = vunpack.c.l.b16 %v473
        %v1031 = vunpack.c.h.b16 %v473
        %v1032 = vunpack.c.l.b16 %v474
        %v1033 = vunpack.c.h.b16 %v474
        %v1034 = vunpack.c.l.b16 %v475
        %v1035 = vunpack.c.l.b16 %v476
        %v1036 = vunpack.c.h.b16 %v476
        %v1037 = vunpack.c.l.b16 %v477
        %v1038 = vunpack.c.h.b16 %v477
        %v1039 = vunpack.c.l.b16 %v478
        %v1040 = vunpack.c.l.b16 %v479
        %v1041 = vunpack.c.h.b16 %v479
        %v1042 = vunpack.c.l.b16 %v480
        %v1043 = vunpack.c.h.b16 %v480
        %v1044 = vunpack.c.l.b16 %v481
        %v1045 = vpack.c.b16 %v970, %v965
        %v1046 = vpack.c.b16 %v971, %v966
        %v1047 = vpack.c.b16 %v972, %v967
        %v1048 = vpack.c.b16 %v973, %v968
        %v1049 = vpack.c.b16 %v974, %v969
        %v1050 = vpack.c.b16 %v980, %v975
        %v1051 = vpack.c.b16 %v981, %v976
        %v1052 = vpack.c.b16 %v982, %v977
        %v1053 = vpack.c.b16 %v983, %v978
        %v1054 = vpack.c.b16 %v984, %v979
        %v1055 = vpack.c.b16 %v990, %v985
        %v1056 = vpack.c.b16 %v991, %v986
        %v1057 = vpack.c.b16 %v992, %v987
        %v1058 = vpack.c.b16 %v993, %v988
        %v1059 = vpack.c.b16 %v994, %v989
        %v1060 = vpack.c.b16 %v1000, %v995
        %v1061 = vpack.c.b16 %v1001, %v996
        %v1062 = vpack.c.b16 %v1002, %v997
        %v1063 = vpack.c.b16 %v1003, %v998
        %v1064 = vpack.c.b16 %v1004, %v999
        %v1065 = vpack.c.b16 %v1010, %v1005
        %v1066 = vpack.c.b16 %v1011, %v1006
        %v1067 = vpack.c.b16 %v1012, %v1007
        %v1068 = vpack.c.b16 %v1013, %v1008
        %v1069 = vpack.c.b16 %v1014, %v1009
        %v1070 = vpack.c.b16 %v1020, %v1015
        %v1071 = vpack.c.b16 %v1021, %v1016
        %v1072 = vpack.c.b16 %v1022, %v1017
        %v1073 = vpack.c.b16 %v1023, %v1018
        %v1074 = vpack.c.b16 %v1024, %v1019
        %v1075 = vpack.c.b16 %v1030, %v1025
        %v1076 = vpack.c.b16 %v1031, %v1026
        %v1077 = vpack.c.b16 %v1032, %v1027
        %v1078 = vpack.c.b16 %v1033, %v1028
        %v1079 = vpack.c.b16 %v1034, %v1029
        %v1080 = vpack.c.b16 %v1040, %v1035
        %v1081 = vpack.c.b16 %v1041, %v1036
        %v1082 = vpack.c.b16 %v1042, %v1037
        %v1083 = vpack.c.b16 %v1043, %v1038
        %v1084 = vpack.c.b16 %v1044, %v1039
        %1125 = vmatprep.subr.bf16.mxu0 %v1081
        %1126 = vmatpush1.bf16.msra.mxu0 %v1080
        %1127 = vmatprep.subr.bf16.mxu0 %v1076
        %1128 = vmatpush1.bf16.msra.mxu0 %v1075
        %1129 = vmatprep.subr.bf16.mxu0 %v1071
        %1130 = vmatpush1.bf16.msra.mxu0 %v1070
        %1131 = vmatprep.subr.bf16.mxu0 %v1066
        %1132 = vmatpush1.bf16.msra.mxu0 %v1065
        %1133 = vmatprep.subr.bf16.mxu0 %v1061
        %1134 = vmatpush1.bf16.msra.mxu0 %v1060
        %1135 = vmatprep.subr.bf16.mxu0 %v1056
        %1136 = vmatpush1.bf16.msra.mxu0 %v1055
        %1137 = vmatprep.subr.bf16.mxu0 %v1051
        %1138 = vmatpush1.bf16.msra.mxu0 %v1050
        %1139 = vmatprep.subr.bf16.mxu0 %v1046
        %1140 = vmatpush1.bf16.msra.mxu0 %v1045
        %1141 = vmatprep.subr.bf16.mxu0 0
        %1142 = vmatpush2.bf16.msra.mxu0 0
        %1143 = vmatprep.subr.bf16.mxu0 0
        %1144 = vmatpush2.bf16.msra.mxu0 0
        %1145 = vmatprep.subr.bf16.mxu0 0
        %1146 = vmatpush2.bf16.msra.mxu0 0
        %1147 = vmatprep.subr.bf16.mxu0 0
        %1148 = vmatpush2.bf16.msra.mxu0 0
        %1149 = vmatprep.subr.bf16.mxu0 0
        %1150 = vmatpush2.bf16.msra.mxu0 0
        %1151 = vmatprep.subr.bf16.mxu0 0
        %1152 = vmatpush2.bf16.msra.mxu0 0
        %1153 = vmatprep.subr.bf16.mxu0 0
        %1154 = vmatpush2.bf16.msra.mxu0 0
        %1155 = vmatprep.subr.bf16.mxu0 0
        %1156 = vmatpush2.bf16.msra.mxu0 0
        %1157 = vmatprep.mubr.bf16.mxu0 0
        %1158 = vmatmul.mubr.bf16.gmra.mxu0 %v913
        %v1159 = vpop.f32.mrf.mxu0
        %v1160 = vadd.f32 %v785, %v1159
        %v1161 = vpop.f32.mrf.mxu0
        %v1162 = vadd.f32 %v787, %v1161
        %v1163 = vpop.f32.mrf.mxu0
        %v1164 = vadd.f32 %v789, %v1163
        %v1165 = vpop.f32.mrf.mxu0
        %v1166 = vadd.f32 %v791, %v1165
        %1167 = vmatprep.mubr.bf16.mxu0 0
        %1168 = vmatmul.mubr.bf16.gmra.mxu0 %v914
        %v1169 = vpop.f32.mrf.mxu0
        %v1170 = vadd.f32 %v795, %v1169
        %v1171 = vpop.f32.mrf.mxu0
        %v1172 = vadd.f32 %v797, %v1171
        %v1173 = vpop.f32.mrf.mxu0
        %v1174 = vadd.f32 %v799, %v1173
        %v1175 = vpop.f32.mrf.mxu0
        %v1176 = vadd.f32 %v801, %v1175
        %1177 = vdwg.mxu0
        %1178 = vmatprep.subr.bf16.mxu0 %v1083
        %1179 = vmatpush1.bf16.msra.mxu0 %v1082
        %1180 = vmatprep.subr.bf16.mxu0 %v1078
        %1181 = vmatpush1.bf16.msra.mxu0 %v1077
        %1182 = vmatprep.subr.bf16.mxu0 %v1073
        %1183 = vmatpush1.bf16.msra.mxu0 %v1072
        %1184 = vmatprep.subr.bf16.mxu0 %v1068
        %1185 = vmatpush1.bf16.msra.mxu0 %v1067
        %1186 = vmatprep.subr.bf16.mxu0 %v1063
        %1187 = vmatpush1.bf16.msra.mxu0 %v1062
        %1188 = vmatprep.subr.bf16.mxu0 %v1058
        %1189 = vmatpush1.bf16.msra.mxu0 %v1057
        %1190 = vmatprep.subr.bf16.mxu0 %v1053
        %1191 = vmatpush1.bf16.msra.mxu0 %v1052
        %1192 = vmatprep.subr.bf16.mxu0 %v1048
        %1193 = vmatpush1.bf16.msra.mxu0 %v1047
        %1194 = vmatprep.subr.bf16.mxu0 0
        %1195 = vmatpush2.bf16.msra.mxu0 0
        %1196 = vmatprep.subr.bf16.mxu0 0
        %1197 = vmatpush2.bf16.msra.mxu0 0
        %1198 = vmatprep.subr.bf16.mxu0 0
        %1199 = vmatpush2.bf16.msra.mxu0 0
        %1200 = vmatprep.subr.bf16.mxu0 0
        %1201 = vmatpush2.bf16.msra.mxu0 0
        %1202 = vmatprep.subr.bf16.mxu0 0
        %1203 = vmatpush2.bf16.msra.mxu0 0
        %1204 = vmatprep.subr.bf16.mxu0 0
        %1205 = vmatpush2.bf16.msra.mxu0 0
        %1206 = vmatprep.subr.bf16.mxu0 0
        %1207 = vmatpush2.bf16.msra.mxu0 0
        %1208 = vmatprep.subr.bf16.mxu0 0
        %1209 = vmatpush2.bf16.msra.mxu0 0
        %1210 = vmatprep.mubr.bf16.mxu0 0
        %1211 = vmatmul.mubr.bf16.gmra.mxu0 %v913
        %v1212 = vpop.f32.mrf.mxu0
        %v1213 = vadd.f32 %v838, %v1212
        %v1214 = vpop.f32.mrf.mxu0
        %v1215 = vadd.f32 %v840, %v1214
        %v1216 = vpop.f32.mrf.mxu0
        %v1217 = vadd.f32 %v842, %v1216
        %v1218 = vpop.f32.mrf.mxu0
        %v1219 = vadd.f32 %v844, %v1218
        %1220 = vmatprep.mubr.bf16.mxu0 0
        %1221 = vmatmul.mubr.bf16.gmra.mxu0 %v914
        %v1222 = vpop.f32.mrf.mxu0
        %v1223 = vadd.f32 %v848, %v1222
        %v1224 = vpop.f32.mrf.mxu0
        %v1225 = vadd.f32 %v850, %v1224
        %v1226 = vpop.f32.mrf.mxu0
        %v1227 = vadd.f32 %v852, %v1226
        %v1228 = vpop.f32.mrf.mxu0
        %v1229 = vadd.f32 %v854, %v1228
        %1230 = vdwg.mxu0
        %1231 = vmatprep.subr.bf16.mxu0 0
        %1232 = vmatpush1.bf16.msra.mxu0 %v1084
        %1233 = vmatprep.subr.bf16.mxu0 0
        %1234 = vmatpush1.bf16.msra.mxu0 %v1079
        %1235 = vmatprep.subr.bf16.mxu0 0
        %1236 = vmatpush1.bf16.msra.mxu0 %v1074
        %1237 = vmatprep.subr.bf16.mxu0 0
        %1238 = vmatpush1.bf16.msra.mxu0 %v1069
        %1239 = vmatprep.subr.bf16.mxu0 0
        %1240 = vmatpush1.bf16.msra.mxu0 %v1064
        %1241 = vmatprep.subr.bf16.mxu0 0
        %1242 = vmatpush1.bf16.msra.mxu0 %v1059
        %1243 = vmatprep.subr.bf16.mxu0 0
        %1244 = vmatpush1.bf16.msra.mxu0 %v1054
        %1245 = vmatprep.subr.bf16.mxu0 0
        %1246 = vmatpush1.bf16.msra.mxu0 %v1049
        %1247 = vmatprep.subr.bf16.mxu0 0
        %1248 = vmatpush2.bf16.msra.mxu0 0
        %1249 = vmatprep.subr.bf16.mxu0 0
        %1250 = vmatpush2.bf16.msra.mxu0 0
        %1251 = vmatprep.subr.bf16.mxu0 0
        %1252 = vmatpush2.bf16.msra.mxu0 0
        %1253 = vmatprep.subr.bf16.mxu0 0
        %1254 = vmatpush2.bf16.msra.mxu0 0
        %1255 = vmatprep.subr.bf16.mxu0 0
        %1256 = vmatpush2.bf16.msra.mxu0 0
        %1257 = vmatprep.subr.bf16.mxu0 0
        %1258 = vmatpush2.bf16.msra.mxu0 0
        %1259 = vmatprep.subr.bf16.mxu0 0
        %1260 = vmatpush2.bf16.msra.mxu0 0
        %1261 = vmatprep.subr.bf16.mxu0 0
        %1262 = vmatpush2.bf16.msra.mxu0 0
        %1263 = vmatprep.mubr.bf16.mxu0 0
        %1264 = vmatmul.mubr.bf16.gmra.mxu0 %v913
        %v1265 = vpop.f32.mrf.mxu0
        %v1266 = vadd.f32 %v891, %v1265
        %v1267 = vpop.f32.mrf.mxu0
        %v1268 = vpop.f32.mrf.mxu0
        %v1269 = vadd.f32 %v894, %v1268
        %v1270 = vpop.f32.mrf.mxu0
        %1271 = vmatprep.mubr.bf16.mxu0 0
        %1272 = vmatmul.mubr.bf16.gmra.mxu0 %v914
        %v1273 = vpop.f32.mrf.mxu0
        %v1274 = vadd.f32 %v899, %v1273
        %v1275 = vpop.f32.mrf.mxu0
        %v1276 = vpop.f32.mrf.mxu0
        %v1277 = vadd.f32 %v902, %v1276
        %v1278 = vpop.f32.mrf.mxu0
        %1279 = vdwg.mxu0
        %v1280 = vld [vmem:[%s4] sm:$0x1f]
        %v1282 = vlaneseq
        %v1283 = vshrl.u32 %v1282, 7
        %v1284 = vsub.s32 0, %v1283
        %v1285 = vrot.slane %v1280, %v1284
        %v1286 = vlaneseq
        %v1287 = vshrl.u32 %v1286, 7
        %v1288 = vsub.s32 1, %v1287
        %v1289 = vrot.slane %v1280, %v1288
        %v1290 = vlaneseq
        %v1291 = vshrl.u32 %v1290, 7
        %v1292 = vsub.s32 2, %v1291
        %v1293 = vrot.slane %v1280, %v1292
        %v1294 = vlaneseq
        %v1295 = vshrl.u32 %v1294, 7
        %v1296 = vsub.s32 3, %v1295
        %v1297 = vrot.slane %v1280, %v1296
        %v1298 = vlaneseq
        %v1299 = vshrl.u32 %v1298, 7
        %v1300 = vsub.s32 4, %v1299
        %v1301 = vrot.slane %v1280, %v1300
        %v1307 = vadd.f32 %v1160, %v1285
        %v1308 = vadd.f32 %v1162, %v1289
        %v1309 = vadd.f32 %v1213, %v1293
        %v1310 = vadd.f32 %v1215, %v1297
        %v1311 = vadd.f32 %v1266, %v1301
        %v1312 = vadd.f32 %v1164, %v1285
        %v1313 = vadd.f32 %v1166, %v1289
        %v1314 = vadd.f32 %v1217, %v1293
        %v1315 = vadd.f32 %v1219, %v1297
        %v1316 = vadd.f32 %v1269, %v1301
        %v1317 = vadd.f32 %v1170, %v1285
        %v1318 = vadd.f32 %v1172, %v1289
        %v1319 = vadd.f32 %v1223, %v1293
        %v1320 = vadd.f32 %v1225, %v1297
        %v1321 = vadd.f32 %v1274, %v1301
        %v1322 = vadd.f32 %v1174, %v1285
        %v1323 = vadd.f32 %v1176, %v1289
        %v1324 = vadd.f32 %v1227, %v1293
        %v1325 = vadd.f32 %v1229, %v1297
        %v1326 = vadd.f32 %v1277, %v1301
        %v1327 = vmul.f32 %v1307, 0.5
        %v1328 = vmul.f32 %v1312, 0.5
        %v1329 = vmul.f32 %v1317, 0.5
        %v1330 = vmul.f32 %v1322, 0.5
        %v1331 = vtanh.pop %v1327
        %v1332 = vtanh.pop %v1328
        %v1333 = vtanh.pop %v1329
        %v1334 = vtanh.pop %v1330
        %v1335 = vadd.f32 %v1331, 1.0
        %v1336 = vadd.f32 %v1332, 1.0
        %v1337 = vadd.f32 %v1333, 1.0
        %v1338 = vadd.f32 %v1334, 1.0
        %v1339 = vmul.f32 %v1335, 0.5
        %v1340 = vmul.f32 %v1336, 0.5
        %v1341 = vmul.f32 %v1337, 0.5
        %v1342 = vmul.f32 %v1338, 0.5
        %v1343 = vmul.f32 %v1308, 0.5
        %v1344 = vmul.f32 %v1313, 0.5
        %v1345 = vmul.f32 %v1318, 0.5
        %v1346 = vmul.f32 %v1323, 0.5
        %v1347 = vtanh.pop %v1343
        %v1348 = vtanh.pop %v1344
        %v1349 = vtanh.pop %v1345
        %v1350 = vtanh.pop %v1346
        %v1351 = vadd.f32 %v1347, 1.0
        %v1352 = vadd.f32 %v1348, 1.0
        %v1353 = vadd.f32 %v1349, 1.0
        %v1354 = vadd.f32 %v1350, 1.0
        %v1355 = vmul.f32 %v1351, 0.5
        %v1356 = vmul.f32 %v1352, 0.5
        %v1357 = vmul.f32 %v1353, 0.5
        %v1358 = vmul.f32 %v1354, 0.5
        %v1359 = vunpack.c.l.bf16 %v426
        %v1360 = vunpack.c.l.bf16 %v427
        %v1361 = vunpack.c.l.bf16 %v428
        %v1362 = vunpack.c.l.bf16 %v429
        %v1363 = vunpack.c.l.bf16 %v430
        %v1364 = vunpack.c.l.bf16 %v431
        %v1365 = vunpack.c.l.bf16 %v432
        %v1366 = vunpack.c.l.bf16 %v433
        %v1367 = vmul.f32 %v1359, %v1339
        %v1368 = vmul.f32 %v1360, %v1340
        %v1369 = vmul.f32 %v1361, %v1341
        %v1370 = vmul.f32 %v1362, %v1342
        %v1371 = vpack.c.bf16 %v1368, %v1367
        %v1372 = vpack.c.bf16 %v1370, %v1369
        %v1373 = vmul.f32 %v1363, %v1355
        %v1374 = vmul.f32 %v1364, %v1356
        %v1375 = vmul.f32 %v1365, %v1357
        %v1376 = vmul.f32 %v1366, %v1358
        %v1377 = vpack.c.bf16 %v1374, %v1373
        %v1378 = vpack.c.bf16 %v1376, %v1375
        %v1379 = vld [vmem:[#allocation10] sm:$0xf]
        %v1380 = vld [vmem:[#allocation10 + $0x4] sm:$0xf]
        %v1381 = vld [vmem:[#allocation10 + $0x8] sm:$0xf]
        %v1382 = vld [vmem:[#allocation10 + $0xc] sm:$0xf]
        %v1383 = vld [vmem:[#allocation10 + $0x10] sm:$0xf]
        %v1384 = vld [vmem:[#allocation10 + $0x14] sm:$0xf]
        %v1385 = vld [vmem:[#allocation10 + $0x18] sm:$0xf]
        %v1386 = vld [vmem:[#allocation10 + $0x1c] sm:$0xf]
        %v1387 = vld [vmem:[#allocation10 + $0x20] sm:$0xf]
        %v1388 = vld [vmem:[#allocation10 + $0x24] sm:$0xf]
        %v1389 = vld [vmem:[#allocation10 + $0x28] sm:$0xf]
        %v1390 = vld [vmem:[#allocation10 + $0x2c] sm:$0xf]
        %v1391 = vld [vmem:[#allocation10 + $0x30] sm:$0xf]
        %v1392 = vld [vmem:[#allocation10 + $0x34] sm:$0xf]
        %v1393 = vld [vmem:[#allocation10 + $0x38] sm:$0xf]
        %v1394 = vld [vmem:[#allocation10 + $0x3c] sm:$0xf]
        %v1395 = vld [vmem:[#allocation11] sm:$0xf]
        %v1396 = vld [vmem:[#allocation11 + $0x4] sm:$0xf]
        %v1397 = vld [vmem:[#allocation11 + $0x8] sm:$0xf]
        %v1398 = vld [vmem:[#allocation11 + $0xc] sm:$0xf]
        %v1399 = vld [vmem:[#allocation11 + $0x10] sm:$0xf]
        %v1400 = vld [vmem:[#allocation11 + $0x14] sm:$0xf]
        %v1401 = vld [vmem:[#allocation11 + $0x18] sm:$0xf]
        %v1402 = vld [vmem:[#allocation11 + $0x1c] sm:$0xf]
        %v1403 = vld [vmem:[#allocation11 + $0x20] sm:$0xf]
        %v1404 = vld [vmem:[#allocation11 + $0x24] sm:$0xf]
        %v1405 = vld [vmem:[#allocation11 + $0x28] sm:$0xf]
        %v1406 = vld [vmem:[#allocation11 + $0x2c] sm:$0xf]
        %v1407 = vld [vmem:[#allocation11 + $0x30] sm:$0xf]
        %v1408 = vld [vmem:[#allocation11 + $0x34] sm:$0xf]
        %v1409 = vld [vmem:[#allocation11 + $0x38] sm:$0xf]
        %v1410 = vld [vmem:[#allocation11 + $0x3c] sm:$0xf]
        %v1427 = vunpack.c.l.b16 %v1395
        %v1428 = vunpack.c.l.b16 %v1396
        %v1429 = vunpack.c.l.b16 %v1397
        %v1430 = vunpack.c.l.b16 %v1398
        %v1431 = vunpack.c.l.b16 %v1399
        %v1432 = vunpack.c.l.b16 %v1400
        %v1433 = vunpack.c.l.b16 %v1401
        %v1434 = vunpack.c.l.b16 %v1402
        %v1435 = vunpack.c.l.b16 %v1403
        %v1436 = vunpack.c.l.b16 %v1404
        %v1437 = vunpack.c.l.b16 %v1405
        %v1438 = vunpack.c.l.b16 %v1406
        %v1439 = vunpack.c.l.b16 %v1407
        %v1440 = vunpack.c.l.b16 %v1408
        %v1441 = vunpack.c.l.b16 %v1409
        %v1442 = vunpack.c.l.b16 %v1410
        %v1443 = vpack.c.b16 %v1428, %v1427
        %v1444 = vpack.c.b16 %v1430, %v1429
        %v1445 = vpack.c.b16 %v1432, %v1431
        %v1446 = vpack.c.b16 %v1434, %v1433
        %v1447 = vpack.c.b16 %v1436, %v1435
        %v1448 = vpack.c.b16 %v1438, %v1437
        %v1449 = vpack.c.b16 %v1440, %v1439
        %v1450 = vpack.c.b16 %v1442, %v1441
        %1459 = vmatprep.subr.bf16.mxu0 0
        %1460 = vmatpush1.bf16.msra.mxu0 %v1450
        %1461 = vmatprep.subr.bf16.mxu0 0
        %1462 = vmatpush1.bf16.msra.mxu0 %v1449
        %1463 = vmatprep.subr.bf16.mxu0 0
        %1464 = vmatpush1.bf16.msra.mxu0 %v1448
        %1465 = vmatprep.subr.bf16.mxu0 0
        %1466 = vmatpush1.bf16.msra.mxu0 %v1447
        %1467 = vmatprep.subr.bf16.mxu0 0
        %1468 = vmatpush1.bf16.msra.mxu0 %v1446
        %1469 = vmatprep.subr.bf16.mxu0 0
        %1470 = vmatpush1.bf16.msra.mxu0 %v1445
        %1471 = vmatprep.subr.bf16.mxu0 0
        %1472 = vmatpush1.bf16.msra.mxu0 %v1444
        %1473 = vmatprep.subr.bf16.mxu0 0
        %1474 = vmatpush1.bf16.msra.mxu0 %v1443
        %1475 = vmatprep.subr.bf16.mxu0 0
        %1476 = vmatpush2.bf16.msra.mxu0 0
        %1477 = vmatprep.subr.bf16.mxu0 0
        %1478 = vmatpush2.bf16.msra.mxu0 0
        %1479 = vmatprep.subr.bf16.mxu0 0
        %1480 = vmatpush2.bf16.msra.mxu0 0
        %1481 = vmatprep.subr.bf16.mxu0 0
        %1482 = vmatpush2.bf16.msra.mxu0 0
        %1483 = vmatprep.subr.bf16.mxu0 0
        %1484 = vmatpush2.bf16.msra.mxu0 0
        %1485 = vmatprep.subr.bf16.mxu0 0
        %1486 = vmatpush2.bf16.msra.mxu0 0
        %1487 = vmatprep.subr.bf16.mxu0 0
        %1488 = vmatpush2.bf16.msra.mxu0 0
        %1489 = vmatprep.subr.bf16.mxu0 0
        %1490 = vmatpush2.bf16.msra.mxu0 0
        %1491 = vmatprep.mubr.bf16.mxu0 0
        %1492 = vmatmul.mubr.bf16.gmra.mxu0 %v1377
        %v1493 = vpop.f32.mrf.mxu0
        %v1494 = vadd.f32 0.0, %v1493
        %v1495 = vpop.f32.mrf.mxu0
        %v1496 = vpop.f32.mrf.mxu0
        %v1497 = vadd.f32 0.0, %v1496
        %v1498 = vpop.f32.mrf.mxu0
        %1499 = vmatprep.mubr.bf16.mxu0 0
        %1500 = vmatmul.mubr.bf16.gmra.mxu0 %v1378
        %v1501 = vpop.f32.mrf.mxu0
        %v1502 = vadd.f32 0.0, %v1501
        %v1503 = vpop.f32.mrf.mxu0
        %v1504 = vpop.f32.mrf.mxu0
        %v1505 = vadd.f32 0.0, %v1504
        %v1506 = vpop.f32.mrf.mxu0
        %1507 = vdwg.mxu0
        %v1524 = vunpack.c.l.b16 %v1379
        %v1525 = vunpack.c.l.b16 %v1380
        %v1526 = vunpack.c.l.b16 %v1381
        %v1527 = vunpack.c.l.b16 %v1382
        %v1528 = vunpack.c.l.b16 %v1383
        %v1529 = vunpack.c.l.b16 %v1384
        %v1530 = vunpack.c.l.b16 %v1385
        %v1531 = vunpack.c.l.b16 %v1386
        %v1532 = vunpack.c.l.b16 %v1387
        %v1533 = vunpack.c.l.b16 %v1388
        %v1534 = vunpack.c.l.b16 %v1389
        %v1535 = vunpack.c.l.b16 %v1390
        %v1536 = vunpack.c.l.b16 %v1391
        %v1537 = vunpack.c.l.b16 %v1392
        %v1538 = vunpack.c.l.b16 %v1393
        %v1539 = vunpack.c.l.b16 %v1394
        %v1540 = vpack.c.b16 %v1525, %v1524
        %v1541 = vpack.c.b16 %v1527, %v1526
        %v1542 = vpack.c.b16 %v1529, %v1528
        %v1543 = vpack.c.b16 %v1531, %v1530
        %v1544 = vpack.c.b16 %v1533, %v1532
        %v1545 = vpack.c.b16 %v1535, %v1534
        %v1546 = vpack.c.b16 %v1537, %v1536
        %v1547 = vpack.c.b16 %v1539, %v1538
        %1556 = vmatprep.subr.bf16.mxu0 0
        %1557 = vmatpush1.bf16.msra.mxu0 %v1547
        %1558 = vmatprep.subr.bf16.mxu0 0
        %1559 = vmatpush1.bf16.msra.mxu0 %v1546
        %1560 = vmatprep.subr.bf16.mxu0 0
        %1561 = vmatpush1.bf16.msra.mxu0 %v1545
        %1562 = vmatprep.subr.bf16.mxu0 0
        %1563 = vmatpush1.bf16.msra.mxu0 %v1544
        %1564 = vmatprep.subr.bf16.mxu0 0
        %1565 = vmatpush1.bf16.msra.mxu0 %v1543
        %1566 = vmatprep.subr.bf16.mxu0 0
        %1567 = vmatpush1.bf16.msra.mxu0 %v1542
        %1568 = vmatprep.subr.bf16.mxu0 0
        %1569 = vmatpush1.bf16.msra.mxu0 %v1541
        %1570 = vmatprep.subr.bf16.mxu0 0
        %1571 = vmatpush1.bf16.msra.mxu0 %v1540
        %1572 = vmatprep.subr.bf16.mxu0 0
        %1573 = vmatpush2.bf16.msra.mxu0 0
        %1574 = vmatprep.subr.bf16.mxu0 0
        %1575 = vmatpush2.bf16.msra.mxu0 0
        %1576 = vmatprep.subr.bf16.mxu0 0
        %1577 = vmatpush2.bf16.msra.mxu0 0
        %1578 = vmatprep.subr.bf16.mxu0 0
        %1579 = vmatpush2.bf16.msra.mxu0 0
        %1580 = vmatprep.subr.bf16.mxu0 0
        %1581 = vmatpush2.bf16.msra.mxu0 0
        %1582 = vmatprep.subr.bf16.mxu0 0
        %1583 = vmatpush2.bf16.msra.mxu0 0
        %1584 = vmatprep.subr.bf16.mxu0 0
        %1585 = vmatpush2.bf16.msra.mxu0 0
        %1586 = vmatprep.subr.bf16.mxu0 0
        %1587 = vmatpush2.bf16.msra.mxu0 0
        %1588 = vmatprep.mubr.bf16.mxu0 0
        %1589 = vmatmul.mubr.bf16.gmra.mxu0 %v1371
        %v1590 = vpop.f32.mrf.mxu0
        %v1591 = vadd.f32 %v1494, %v1590
        %v1592 = vpop.f32.mrf.mxu0
        %v1593 = vpop.f32.mrf.mxu0
        %v1594 = vadd.f32 %v1497, %v1593
        %v1595 = vpop.f32.mrf.mxu0
        %1596 = vmatprep.mubr.bf16.mxu0 0
        %1597 = vmatmul.mubr.bf16.gmra.mxu0 %v1372
        %v1598 = vpop.f32.mrf.mxu0
        %v1599 = vadd.f32 %v1502, %v1598
        %v1600 = vpop.f32.mrf.mxu0
        %v1601 = vpop.f32.mrf.mxu0
        %v1602 = vadd.f32 %v1505, %v1601
        %v1603 = vpop.f32.mrf.mxu0
        %1604 = vdwg.mxu0
        %v1605 = vld [vmem:[%s7] sm:$0x1]
        %v1607 = vlaneseq
        %v1608 = vshrl.u32 %v1607, 7
        %v1609 = vsub.s32 0, %v1608
        %v1610 = vrot.slane %v1605, %v1609
        %v1612 = vadd.f32 %v1591, %v1610
        %v1613 = vadd.f32 %v1594, %v1610
        %v1614 = vadd.f32 %v1599, %v1610
        %v1615 = vadd.f32 %v1602, %v1610
        %v1616 = vmul.f32 %v1612, 0.5
        %v1617 = vmul.f32 %v1613, 0.5
        %v1618 = vmul.f32 %v1614, 0.5
        %v1619 = vmul.f32 %v1615, 0.5
        %v1620 = vtanh.pop %v1616
        %v1621 = vtanh.pop %v1617
        %v1622 = vtanh.pop %v1618
        %v1623 = vtanh.pop %v1619
        %v1624 = vadd.f32 %v1620, 1.0
        %v1625 = vadd.f32 %v1621, 1.0
        %v1626 = vadd.f32 %v1622, 1.0
        %v1627 = vadd.f32 %v1623, 1.0
        %v1628 = vmul.f32 %v1624, 0.5
        %v1629 = vmul.f32 %v1625, 0.5
        %v1630 = vmul.f32 %v1626, 0.5
        %v1631 = vmul.f32 %v1627, 0.5
        %v1632 = vmax.f32 %v1309, %v1310
        %v1633 = vmax.f32 %v1314, %v1315
        %v1634 = vmax.f32 %v1319, %v1320
        %v1635 = vmax.f32 %v1324, %v1325
        %v1636 = vmax.f32 %v1632, %v1311
        %v1637 = vmax.f32 %v1633, %v1316
        %v1638 = vmax.f32 %v1634, %v1321
        %v1639 = vmax.f32 %v1635, %v1326
        %v1640 = vsub.f32 %v1309, %v1636
        %v1641 = vsub.f32 %v1314, %v1637
        %v1642 = vsub.f32 %v1319, %v1638
        %v1643 = vsub.f32 %v1324, %v1639
        %v1644 = vmul.f32 %v1640, 1.442695
        %v1645 = vpow.pop %v1644
        %v1646 = vmul.f32 %v1641, 1.442695
        %v1647 = vpow.pop %v1646
        %v1648 = vmul.f32 %v1642, 1.442695
        %v1649 = vpow.pop %v1648
        %v1650 = vmul.f32 %v1643, 1.442695
        %v1651 = vpow.pop %v1650
        %v1652 = vsub.f32 %v1310, %v1636
        %v1653 = vsub.f32 %v1315, %v1637
        %v1654 = vsub.f32 %v1320, %v1638
        %v1655 = vsub.f32 %v1325, %v1639
        %v1656 = vmul.f32 %v1652, 1.442695
        %v1657 = vpow.pop %v1656
        %v1658 = vmul.f32 %v1653, 1.442695
        %v1659 = vpow.pop %v1658
        %v1660 = vmul.f32 %v1654, 1.442695
        %v1661 = vpow.pop %v1660
        %v1662 = vmul.f32 %v1655, 1.442695
        %v1663 = vpow.pop %v1662
        %v1664 = vsub.f32 %v1311, %v1636
        %v1665 = vsub.f32 %v1316, %v1637
        %v1666 = vsub.f32 %v1321, %v1638
        %v1667 = vsub.f32 %v1326, %v1639
        %v1668 = vmul.f32 %v1664, 1.442695
        %v1669 = vpow.pop %v1668
        %v1670 = vmul.f32 %v1665, 1.442695
        %v1671 = vpow.pop %v1670
        %v1672 = vmul.f32 %v1666, 1.442695
        %v1673 = vpow.pop %v1672
        %v1674 = vmul.f32 %v1667, 1.442695
        %v1675 = vpow.pop %v1674
        %v1676 = vadd.f32 %v1645, %v1657
        %v1677 = vadd.f32 %v1647, %v1659
        %v1678 = vadd.f32 %v1649, %v1661
        %v1679 = vadd.f32 %v1651, %v1663
        %v1680 = vadd.f32 %v1676, %v1669
        %v1681 = vadd.f32 %v1677, %v1671
        %v1682 = vadd.f32 %v1678, %v1673
        %v1683 = vadd.f32 %v1679, %v1675
        %v1684 = vrcp.pop %v1680
        %v1685 = vrcp.pop %v1681
        %v1686 = vrcp.pop %v1682
        %v1687 = vrcp.pop %v1683
        %v1688 = vmul.f32 %v1359, %v1645
        %v1689 = vmul.f32 %v1360, %v1647
        %v1690 = vmul.f32 %v1361, %v1649
        %v1691 = vmul.f32 %v1362, %v1651
        %v1692 = vmul.f32 %v1363, %v1657
        %v1693 = vmul.f32 %v1364, %v1659
        %v1694 = vmul.f32 %v1365, %v1661
        %v1695 = vmul.f32 %v1366, %v1663
        %v1696 = vadd.f32 %v1688, %v1692
        %v1697 = vadd.f32 %v1689, %v1693
        %v1698 = vadd.f32 %v1690, %v1694
        %v1699 = vadd.f32 %v1691, %v1695
        %v1700 = vmul.f32 %v1628, %v1669
        %v1701 = vmul.f32 %v1629, %v1671
        %v1702 = vmul.f32 %v1630, %v1673
        %v1703 = vmul.f32 %v1631, %v1675
        %v1704 = vadd.f32 %v1696, %v1700
        %v1705 = vadd.f32 %v1697, %v1701
        %v1706 = vadd.f32 %v1698, %v1702
        %v1707 = vadd.f32 %v1699, %v1703
        %v1708 = vmul.f32 %v1704, %v1684
        %v1709 = vmul.f32 %v1705, %v1685
        %v1710 = vmul.f32 %v1706, %v1686
        %v1711 = vmul.f32 %v1707, %v1687
        %v1712 = vpack.c.bf16 %v1709, %v1708
        %v1713 = vpack.c.bf16 %v1711, %v1710
        %v1716 = vunpack.c.l.b16 %v1712
        %v1717 = vunpack.c.h.b16 %v1712
        %v1718 = vunpack.c.l.b16 %v1713
        %v1719 = vunpack.c.h.b16 %v1713
        %v1720 = vpack.c.b16 %v1716, %v1716
        %v1721 = vpack.c.b16 %v1717, %v1717
        %v1722 = vpack.c.b16 %v1718, %v1718
        %v1723 = vpack.c.b16 %v1719, %v1719
        %1728 = vst [vmem:[%s421] sm:$0xf] %v1720
        %1729 = vst [vmem:[%s421 + $0x4] sm:$0xf] %v1721
        %1730 = vst [vmem:[%s421 + $0x8] sm:$0xf] %v1722
        %1731 = vst [vmem:[%s421 + $0xc] sm:$0xf] %v1723
        %s1732 = sand.u32 %s216, 1
        %s1733 = scalar_lea.sflag [#allocation4], %s1732
        %s1734 = sand.u32 %s216, 1
        %s1735 = smul.addr %s1734, 16
        %s1736 = scalar_lea.vmem [#allocation13], %s1735
        // Predicated region
        $region77: #{tpu_custom_call.1} parent=51 // pred_check
          %p1737 = pneg %p226
        $region78: #{tpu_custom_call.1} parent=51 // pred_check_branch
          %1739 = sbr.rel (%p1737) target = $region80
        $region79: #{tpu_custom_call.1} parent=51 // pred_region
          %s1740 = smul.u32 4, %s30
          %s1742 = ssub.s32 256, 256
          %1743 = vsyncadd %s1733, %s1742
          %s1744 = smul.addr %s1740, 64
          %s1745 = scalar_lea.hbm %s8, %s1744
          %s1746 = sshll.u32 %s1736, 4
          %s1747 = int_to_ptr.vmem [resolvable:$true] %s1746
          %1752 = dma.vmem_to_hbm [thread:$0]  %s1747, 256, %s1745, %s1733, 64, 64, 4
        $region80: #{tpu_custom_call.1} parent=51 // pred_fallthru
          _
      $region52: #{tpu_custom_call.1} parent=5 // pred_fallthru
        _
      %p1753 = scmp.le.s32.totalorder 2, %s25
      // Predicated region
      $region81: #{tpu_custom_call.1} parent=5 // pred_check
        %p1754 = pneg %p1753
      $region82: #{tpu_custom_call.1} parent=5 // pred_check_branch
        %1756 = sbr.rel (%p1754) target = $region84
      $region83: #{tpu_custom_call.1} parent=5 // pred_region
        %s1757 = ssub.s32 %s25, 2
        // Predicated region
        $region85: #{tpu_custom_call.1} parent=83 // pred_check
          %p1758 = pneg %p232
        $region86: #{tpu_custom_call.1} parent=83 // pred_check_branch
          %1760 = sbr.rel (%p1758) target = $region88
        $region87: #{tpu_custom_call.1} parent=83 // pred_region
          %s1761 = sand.u32 %s217, 1
          %s1762 = scalar_lea.sflag [#allocation4], %s1761
          %s1763 = sand.u32 %s217, 1
          %s1764 = smul.addr %s1763, 16
          %s1765 = scalar_lea.vmem [#allocation13], %s1764
          %1766 = dma.done %s1762, 256
        $region88: #{tpu_custom_call.1} parent=83 // pred_fallthru
          _
      $region84: #{tpu_custom_call.1} parent=5 // pred_fallthru
        _
    $region6: #{tpu_custom_call.1} parent=1 // loop_footer
      %s29 = sadd.s32 1, %s25
    $region7: #{tpu_custom_call.1} parent=1 // loop_footer_branch
      %24 = sbr.rel target = $region3
    $region8: #{tpu_custom_call.1} parent=1 // loop_exit
      _
    %1767 = vsyncpa [#allocation3], 1
    %s1768 = scalar_lea.sflag [#allocation3], 1
    %1769 = vsyncpa %s1768, 1
    %1770 = vsyncpa [#allocation6], 1
    %s1771 = scalar_lea.sflag [#allocation6], 1
    %1772 = vsyncpa %s1771, 1
    %1773 = vsyncpa [#allocation9], 1
    %1774 = vsyncpa [#allocation12], 1
    %1775 = vsyncpa [#allocation4], 1
    %s1776 = scalar_lea.sflag [#allocation4], 1
    %1777 = vsyncpa %s1776, 1

</llo_original>
